<compile_context>
chip_gen: v7x
topology: tpu7x:2x2x1
jax: 0.10.0
libtpu: 0.0.40
codegen_flags: <defaults>
</compile_context>

<pallas_src>
import functools

import jax
import jax.numpy as jnp
from jax import lax
from jax.experimental import pallas as pl
from jax.experimental.pallas import tpu as pltpu
import numpy as np


def _round_up(x, m):
    return (x + m - 1) // m * m


def _block_a_kernel(K, H, W, tile_h, WP2, Lh, Lo, L_in,
                    x_hbm, w1_ref, b1_ref, w2_ref, b2_ref,
                    o_ref, xbuf, sem):
    """One (batch, row-tile) per grid step; spatial dims flattened row-major.

    x_hbm : (B, Cin, Lim)        f32  padded input, flat rows of width WP2 (stays in HBM)
    w1_ref: (K, Cmid, K*Cin)     bf16 conv1 weights grouped by kernel row kh
    b1_ref: (Cmid, 1)            f32
    w2_ref: (K, Cout, K*Cmid)    bf16 conv2 weights grouped by kh (res_scale folded in)
    b2_ref: (Cout, 1)            f32  (res_scale folded in)
    o_ref : (1, Cout, Lo)        output tile (flat, row stride WP2, WP2 % 128 == 0)
    xbuf  : (Cin, L_in)          f32 VMEM scratch for this step's halo'd input window
    sem   : DMA semaphore (1,)
    """
    p = K // 2
    b = pl.program_id(0)
    t = pl.program_id(1)

    # ---- manual DMA of this tile's (overlapping, halo'd) row window ----------------
    start = pl.multiple_of(t * (tile_h * WP2), 128)
    cp = pltpu.make_async_copy(x_hbm.at[b, :, pl.ds(start, L_in)], xbuf, sem.at[0])
    cp.start()
    cp.wait()

    xb = xbuf[...]                       # (Cin, L_in) f32, loaded once
    xb16 = xb.astype(jnp.bfloat16)

    # ---- conv1: 3 accumulating im2col matmuls (one per kernel row kh) ---------------
    acc1 = None
    for kh in range(K):
        base = kh * WP2                  # 128-aligned row shift
        r_g = jnp.concatenate(
            [xb16[:, base + kw:base + kw + Lh] for kw in range(K)], axis=0)
        d = jnp.dot(w1_ref[kh], r_g, preferred_element_type=jnp.float32)
        acc1 = d if acc1 is None else acc1 + d

    h = jnp.maximum(acc1 + b1_ref[...], 0.0)        # bias + ReLU, (Cmid, Lh) f32

    # ---- in-kernel mask reproducing conv2's zero padding of the intermediate --------
    # Valid intermediate positions: original col in [0, W) and original row in [0, H).
    if WP2 & (WP2 - 1) == 0:
        q = lax.broadcasted_iota(jnp.int32, (1, Lh), 1)
        col = jnp.bitwise_and(q, WP2 - 1)
        row_lo = jnp.maximum(p - t * tile_h, 0) * WP2
        row_hi = (H + p - t * tile_h) * WP2
        keep = (col >= p) & (col < p + W) & (q >= row_lo) & (q < row_hi)
        mask = keep.astype(jnp.float32)
    else:
        # TODO(synk): general (non power-of-two WP2) path builds the mask 2-D and
        # reshapes it flat (small in-VMEM relayout, no HBM traffic).
        rows = Lh // WP2
        ri = lax.broadcasted_iota(jnp.int32, (rows, WP2), 0)
        ci = lax.broadcasted_iota(jnp.int32, (rows, WP2), 1)
        r_orig = ri + (t * tile_h - p)
        keep2 = (ci >= p) & (ci < p + W) & (r_orig >= 0) & (r_orig < H)
        mask = keep2.astype(jnp.float32).reshape(1, Lh)

    h = h * mask
    hb = h.astype(jnp.bfloat16)

    # ---- conv2: 3 accumulating im2col matmuls (res_scale folded into weights/bias) --
    acc2 = None
    for kh in range(K):
        base = kh * WP2
        r_g = jnp.concatenate(
            [hb[:, base + kw:base + kw + Lo] for kw in range(K)], axis=0)
        d = jnp.dot(w2_ref[kh], r_g, preferred_element_type=jnp.float32)
        acc2 = d if acc2 is None else acc2 + d
    res = acc2 + b2_ref[...]

    # ---- residual add: x re-read in f32 from the resident input tile ----------------
    off_res = 2 * p * WP2 + 2 * p
    o_ref[0] = (res + xb[:, off_res:off_res + Lo]).astype(o_ref.dtype)


def _vmem_params():
    """Generation-aware VMEM budget / default tile height."""
    cap = 128 * 1024 * 1024
    try:
        cap = int(pltpu.get_tpu_info().vmem_capacity_bytes)
    except Exception:
        pass
    if cap <= 64 * 1024 * 1024:            # v7x-class: 64 MiB physical, leave headroom
        return 8, 32 * 1024 * 1024
    return 16, 64 * 1024 * 1024            # v5e/v6e: 128 MiB, bigger tiles


def block_a_forward(x_nchw, w1_oihw, b1, w2_oihw, b2, *, res_scale=1.0, tile_h=None):
    """Runs _Block_A forward. x_nchw: (B, C, H, W) float32 -> (B, C, H, W)."""
    B, Cin, H, W = x_nchw.shape
    Cmid = w1_oihw.shape[0]
    Cout = w2_oihw.shape[0]
    K = w1_oihw.shape[2]
    assert K % 2 == 1, "padding convention matches PyTorch only for odd kernel sizes"
    assert Cout == Cin, "residual add requires matching channel counts"
    p = K // 2

    default_tile_h, vmem_limit = _vmem_params()
    if tile_h is None:
        tile_h = default_tile_h

    # ---- geometry: lane-aligned flat rows (all flat lengths are multiples of 128) ----
    n_t = pl.cdiv(H, tile_h)
    WP2 = _round_up(W + 4 * p, 128)         # padded row width (2p halo each side)
    TH2 = tile_h + 2 * p                    # intermediate rows per tile
    TH4 = tile_h + 4 * p                    # input rows per tile
    Lo = tile_h * WP2                       # flat output length per tile
    Lh = (TH2 + 1) * WP2                    # flat intermediate length (+1 slack row)
    L_in = (TH4 + 1) * WP2 + 128            # flat input window length (+ slack)

    # ---- one-shot padding of the input; no overlapping-tile materialization ----------
    Hp_rows = n_t * tile_h + 4 * p + 2      # enough rows for the last tile's window
    xpad = jnp.pad(x_nchw, ((0, 0), (0, 0),
                            (2 * p, Hp_rows - H - 2 * p),
                            (2 * p, WP2 - W - 2 * p)))
    x_flat = xpad.reshape(B, Cin, Hp_rows * WP2)     # free reshape (row-major)

    # ---- kh-grouped weight matrices; res_scale folded into conv2; bf16 for the MXU ---
    # group g holds taps (kh=g, kw=0..K-1) flattened as [kw, cin] to match the concat.
    w1g = jnp.transpose(w1_oihw, (2, 0, 3, 1)).reshape(K, Cmid, K * Cin)
    w2g = jnp.transpose(w2_oihw, (2, 0, 3, 1)).reshape(K, Cout, K * Cmid)
    w1g = w1g.astype(jnp.bfloat16)
    w2g = (w2g * res_scale).astype(jnp.bfloat16)
    b1m = b1.reshape(Cmid, 1).astype(jnp.float32)
    b2m = (b2 * res_scale).reshape(Cout, 1).astype(jnp.float32)

    kernel = functools.partial(_block_a_kernel, K, H, W, tile_h, WP2, Lh, Lo, L_in)

    out_flat = pl.pallas_call(
        kernel,
        out_shape=jax.ShapeDtypeStruct((B, Cout, n_t * Lo), x_nchw.dtype),
        grid=(B, n_t),
        in_specs=[
            pl.BlockSpec(memory_space=pl.ANY),                        # x stays in HBM
            pl.BlockSpec((K, Cmid, K * Cin), lambda b, t: (0, 0, 0)),
            pl.BlockSpec((Cmid, 1), lambda b, t: (0, 0)),
            pl.BlockSpec((K, Cout, K * Cmid), lambda b, t: (0, 0, 0)),
            pl.BlockSpec((Cout, 1), lambda b, t: (0, 0)),
        ],
        out_specs=pl.BlockSpec((1, Cout, Lo), lambda b, t: (b, 0, t)),
        scratch_shapes=[
            pltpu.VMEM((Cin, L_in), jnp.float32),
            pltpu.SemaphoreType.DMA((1,)),
        ],
        compiler_params=pltpu.CompilerParams(
            dimension_semantics=("parallel", "parallel"),
            vmem_limit_bytes=vmem_limit),
    )(x_flat, w1g, b1m, w2g, b2m)

    # ---- un-flatten: free reshape (WP2 is 128-aligned) + crop; no transpose ----------
    out = out_flat.reshape(B, Cout, n_t * tile_h, WP2)
    return out[:, :, :H, :W]


def _weight_norm(v, g):
    """torch.nn.utils.weight_norm reparam: w = g * v / ||v||, norm over dims (1,2,3)."""
    norm = jnp.sqrt(jnp.sum(v * v, axis=(1, 2, 3), keepdims=True))
    return g.reshape(-1, 1, 1, 1) * v / norm


def _reference_forward(x, w1, b1, w2, b2, res_scale):
    """Pure-JAX reference (NCHW, matches PyTorch Conv2d with 'same' padding)."""
    dn = ("NCHW", "OIHW", "NCHW")
    h = lax.conv_general_dilated(x, w1, (1, 1), "SAME", dimension_numbers=dn)
    h = jnp.maximum(h + b1.reshape(1, -1, 1, 1), 0.0)
    r = lax.conv_general_dilated(h, w2, (1, 1), "SAME", dimension_numbers=dn)
    r = r + b2.reshape(1, -1, 1, 1)
    return r * res_scale + x


if __name__ == "__main__":
    # Module config: n_feats=4, kernel_size=3  => block_feats = 16
    n_feats, kernel_size, res_scale = 4, 3, 1.0
    block_feats = 4 * n_feats
    B, H, W = 2, 16, 16

    key = jax.random.PRNGKey(0)
    k_x, k_v1, k_g1, k_b1, k_v2, k_g2, k_b2, k_x2 = jax.random.split(key, 8)

    x = jax.random.normal(k_x, (B, n_feats, H, W), dtype=jnp.float32)

    v1 = jax.random.normal(k_v1, (block_feats, n_feats, kernel_size, kernel_size),
                           dtype=jnp.float32) * 0.1
    g1 = jax.random.uniform(k_g1, (block_feats,), minval=0.5, maxval=1.5,
                            dtype=jnp.float32)
    b1 = jax.random.normal(k_b1, (block_feats,), dtype=jnp.float32) * 0.1

    v2 = jax.random.normal(k_v2, (n_feats, block_feats, kernel_size, kernel_size),
                           dtype=jnp.float32) * 0.1
    g2 = jax.random.uniform(k_g2, (n_feats,), minval=0.5, maxval=1.5,
                            dtype=jnp.float32)
    b2 = jax.random.normal(k_b2, (n_feats,), dtype=jnp.float32) * 0.1

    w1 = _weight_norm(v1, g1)  # (block_feats, n_feats, K, K)  OIHW
    w2 = _weight_norm(v2, g2)  # (n_feats, block_feats, K, K)  OIHW

    # Test 1: tile_h=8 -> 2 row tiles per image (grid 2x2), exercises halo + row mask.
    out = block_a_forward(x, w1, b1, w2, b2, res_scale=res_scale, tile_h=8)
    out = jax.block_until_ready(out)
    ref = _reference_forward(x, w1, b1, w2, b2, res_scale)
    # bf16 matmul operands with f32 accumulation -> ~1e-2 absolute agreement.
    np.testing.assert_allclose(np.asarray(out), np.asarray(ref),
                               rtol=2e-2, atol=2e-2)

    # Test 2: non-divisible H and narrow W (H=13, W=10, tile_h=5 -> 3 tiles, ragged tail).
    x2 = jax.random.normal(k_x2, (1, n_feats, 13, 10), dtype=jnp.float32)
    out2 = block_a_forward(x2, w1, b1, w2, b2, res_scale=res_scale, tile_h=5)
    out2 = jax.block_until_ready(out2)
    ref2 = _reference_forward(x2, w1, b1, w2, b2, res_scale)
    np.testing.assert_allclose(np.asarray(out2), np.asarray(ref2),
                               rtol=2e-2, atol=2e-2)

    print("KERNEL_OK")
</pallas_src>

<mosaic_0001>
module attributes {stable_mosaic.version = 11 : i64} {
  func.func @_block_a_kernel(%arg0: i32, %arg1: i32, %arg2: memref<2x4x2816xf32, #tpu.memory_space<any>>, %arg3: memref<3x16x12xbf16, #tpu.memory_space<vmem>>, %arg4: memref<16x1xf32, #tpu.memory_space<vmem>>, %arg5: memref<3x4x48xbf16, #tpu.memory_space<vmem>>, %arg6: memref<4x1xf32, #tpu.memory_space<vmem>>, %arg7: memref<1x4x1024xf32, #tpu.memory_space<vmem>>, %arg8: memref<4x1792xf32, #tpu.memory_space<vmem>>, %arg9: memref<1x!tpu.dma_semaphore, #tpu.memory_space<semaphore_mem>>) attributes {dimension_semantics = [#tpu.dimension_semantics<parallel>, #tpu.dimension_semantics<parallel>], iteration_bounds = array<i64: 2, 2>, scalar_prefetch = 0 : i64, scratch_operands = 2 : i64, tpu.core_type = #tpu.core_type<tc>, window_params = [{}, {pipeline_mode = #tpu.pipeline_mode<synchronous>, transform_indices = @transform_1, window_bounds = array<i64: 3, 16, 12>}, {pipeline_mode = #tpu.pipeline_mode<synchronous>, transform_indices = @transform_2, window_bounds = array<i64: 16, 1>}, {pipeline_mode = #tpu.pipeline_mode<synchronous>, transform_indices = @transform_3, window_bounds = array<i64: 3, 4, 48>}, {pipeline_mode = #tpu.pipeline_mode<synchronous>, transform_indices = @transform_4, window_bounds = array<i64: 4, 1>}, {transform_indices = @transform_5, window_bounds = array<i64: 1, 4, 1024>}]} {
    %c1024_i32 = arith.constant 1024 : i32
    %0 = arith.muli %arg1, %c1024_i32 : i32
    %1 = tpu.assume_multiple %0, 128 : i32
    %c0_i32 = arith.constant 0 : i32
    %c0_i32_0 = arith.constant 0 : i32
    %2 = tpu.memref_slice %arg2[%arg0, %c0_i32_0, %1] : memref<2x4x2816xf32, #tpu.memory_space<any>> -> memref<1x4x1792xf32, #tpu.memory_space<any>>
    %3 = tpu.memref_squeeze %2 : memref<1x4x1792xf32, #tpu.memory_space<any>> -> memref<4x1792xf32, #tpu.memory_space<any>>
    %4 = tpu.memref_slice %arg9[%c0_i32] : memref<1x!tpu.dma_semaphore, #tpu.memory_space<semaphore_mem>> -> memref<1x!tpu.dma_semaphore, #tpu.memory_space<semaphore_mem>>
    %5 = tpu.memref_squeeze %4 : memref<1x!tpu.dma_semaphore, #tpu.memory_space<semaphore_mem>> -> memref<!tpu.dma_semaphore, #tpu.memory_space<semaphore_mem>>
    tpu.enqueue_dma source(%3 : memref<4x1792xf32, #tpu.memory_space<any>>) target(%arg8 : memref<4x1792xf32, #tpu.memory_space<vmem>>) target_semaphore(%5 : memref<!tpu.dma_semaphore, #tpu.memory_space<semaphore_mem>>)
    %c0_i32_1 = arith.constant 0 : i32
    %c0_i32_2 = arith.constant 0 : i32
    %6 = tpu.memref_slice %arg2[%arg0, %c0_i32_2, %1] : memref<2x4x2816xf32, #tpu.memory_space<any>> -> memref<1x4x1792xf32, #tpu.memory_space<any>>
    %7 = tpu.memref_squeeze %6 : memref<1x4x1792xf32, #tpu.memory_space<any>> -> memref<4x1792xf32, #tpu.memory_space<any>>
    %8 = tpu.memref_slice %arg9[%c0_i32_1] : memref<1x!tpu.dma_semaphore, #tpu.memory_space<semaphore_mem>> -> memref<1x!tpu.dma_semaphore, #tpu.memory_space<semaphore_mem>>
    %9 = tpu.memref_squeeze %8 : memref<1x!tpu.dma_semaphore, #tpu.memory_space<semaphore_mem>> -> memref<!tpu.dma_semaphore, #tpu.memory_space<semaphore_mem>>
    tpu.wait_dma2 semaphore(%9 : memref<!tpu.dma_semaphore, #tpu.memory_space<semaphore_mem>>) src(%7 : memref<4x1792xf32, #tpu.memory_space<any>>) dst(%arg8 : memref<4x1792xf32, #tpu.memory_space<vmem>>)
    %c0 = arith.constant 0 : index
    %c0_3 = arith.constant 0 : index
    %10 = vector.load %arg8[%c0, %c0_3] : memref<4x1792xf32, #tpu.memory_space<vmem>>, vector<4x1792xf32>
    %11 = arith.truncf %10 : vector<4x1792xf32> to vector<4x1792xbf16>
    %12 = vector.extract_strided_slice %11 {offsets = [0, 0], sizes = [4, 1408], strides = [1, 1]} : vector<4x1792xbf16> to vector<4x1408xbf16>
    %13 = vector.extract_strided_slice %11 {offsets = [0, 1], sizes = [4, 1408], strides = [1, 1]} : vector<4x1792xbf16> to vector<4x1408xbf16>
    %14 = vector.extract_strided_slice %11 {offsets = [0, 2], sizes = [4, 1408], strides = [1, 1]} : vector<4x1792xbf16> to vector<4x1408xbf16>
    %15 = tpu.concatenate %12, %13, %14 in 0 : vector<4x1408xbf16>, vector<4x1408xbf16>, vector<4x1408xbf16> -> vector<12x1408xbf16>
    %c0_4 = arith.constant 0 : index
    %c0_5 = arith.constant 0 : index
    %c0_6 = arith.constant 0 : index
    %16 = vector.load %arg3[%c0_4, %c0_5, %c0_6] : memref<3x16x12xbf16, #tpu.memory_space<vmem>>, vector<1x16x12xbf16>
    %17 = vector.shape_cast %16 : vector<1x16x12xbf16> to vector<16x12xbf16>
    %cst = arith.constant dense<0.000000e+00> : vector<16x1408xf32>
    %18 = tpu.matmul %17, %15, %cst {dimension_numbers = #tpu.dot_dimension_numbers<[1], [0], [0], [1], [0, 0, 1, 1], [], []>} : vector<16x12xbf16>, vector<12x1408xbf16>, vector<16x1408xf32> -> vector<16x1408xf32>
    %19 = vector.extract_strided_slice %11 {offsets = [0, 128], sizes = [4, 1408], strides = [1, 1]} : vector<4x1792xbf16> to vector<4x1408xbf16>
    %20 = vector.extract_strided_slice %11 {offsets = [0, 129], sizes = [4, 1408], strides = [1, 1]} : vector<4x1792xbf16> to vector<4x1408xbf16>
    %21 = vector.extract_strided_slice %11 {offsets = [0, 130], sizes = [4, 1408], strides = [1, 1]} : vector<4x1792xbf16> to vector<4x1408xbf16>
    %22 = tpu.concatenate %19, %20, %21 in 0 : vector<4x1408xbf16>, vector<4x1408xbf16>, vector<4x1408xbf16> -> vector<12x1408xbf16>
    %c1 = arith.constant 1 : index
    %c0_7 = arith.constant 0 : index
    %c0_8 = arith.constant 0 : index
    %23 = vector.load %arg3[%c1, %c0_7, %c0_8] : memref<3x16x12xbf16, #tpu.memory_space<vmem>>, vector<1x16x12xbf16>
    %24 = vector.shape_cast %23 : vector<1x16x12xbf16> to vector<16x12xbf16>
    %cst_9 = arith.constant dense<0.000000e+00> : vector<16x1408xf32>
    %25 = tpu.matmul %24, %22, %cst_9 {dimension_numbers = #tpu.dot_dimension_numbers<[1], [0], [0], [1], [0, 0, 1, 1], [], []>} : vector<16x12xbf16>, vector<12x1408xbf16>, vector<16x1408xf32> -> vector<16x1408xf32>
    %26 = arith.addf %18, %25 : vector<16x1408xf32>
    %27 = vector.extract_strided_slice %11 {offsets = [0, 256], sizes = [4, 1408], strides = [1, 1]} : vector<4x1792xbf16> to vector<4x1408xbf16>
    %28 = vector.extract_strided_slice %11 {offsets = [0, 257], sizes = [4, 1408], strides = [1, 1]} : vector<4x1792xbf16> to vector<4x1408xbf16>
    %29 = vector.extract_strided_slice %11 {offsets = [0, 258], sizes = [4, 1408], strides = [1, 1]} : vector<4x1792xbf16> to vector<4x1408xbf16>
    %30 = tpu.concatenate %27, %28, %29 in 0 : vector<4x1408xbf16>, vector<4x1408xbf16>, vector<4x1408xbf16> -> vector<12x1408xbf16>
    %c2 = arith.constant 2 : index
    %c0_10 = arith.constant 0 : index
    %c0_11 = arith.constant 0 : index
    %31 = vector.load %arg3[%c2, %c0_10, %c0_11] : memref<3x16x12xbf16, #tpu.memory_space<vmem>>, vector<1x16x12xbf16>
    %32 = vector.shape_cast %31 : vector<1x16x12xbf16> to vector<16x12xbf16>
    %cst_12 = arith.constant dense<0.000000e+00> : vector<16x1408xf32>
    %33 = tpu.matmul %32, %30, %cst_12 {dimension_numbers = #tpu.dot_dimension_numbers<[1], [0], [0], [1], [0, 0, 1, 1], [], []>} : vector<16x12xbf16>, vector<12x1408xbf16>, vector<16x1408xf32> -> vector<16x1408xf32>
    %34 = arith.addf %26, %33 : vector<16x1408xf32>
    %c0_13 = arith.constant 0 : index
    %c0_14 = arith.constant 0 : index
    %35 = vector.load %arg4[%c0_13, %c0_14] : memref<16x1xf32, #tpu.memory_space<vmem>>, vector<16x1xf32>
    %36 = vector.broadcast %35 : vector<16x1xf32> to vector<16x1408xf32>
    %37 = arith.addf %34, %36 : vector<16x1408xf32>
    %cst_15 = arith.constant 0.000000e+00 : f32
    %38 = vector.broadcast %cst_15 : f32 to vector<16x1408xf32>
    %39 = arith.maximumf %37, %38 : vector<16x1408xf32>
    %40 = tpu.iota {dimensions = array<i32: 1>} : vector<1x1408xi32>
    %c127_i32 = arith.constant 127 : i32
    %41 = vector.broadcast %c127_i32 : i32 to vector<1x1408xi32>
    %42 = arith.andi %40, %41 : vector<1x1408xi32>
    %c8_i32 = arith.constant 8 : i32
    %43 = arith.muli %arg1, %c8_i32 : i32
    %c1_i32 = arith.constant 1 : i32
    %44 = arith.subi %c1_i32, %43 : i32
    %c0_i32_16 = arith.constant 0 : i32
    %45 = arith.maxsi %44, %c0_i32_16 : i32
    %c128_i32 = arith.constant 128 : i32
    %46 = arith.muli %45, %c128_i32 : i32
    %c8_i32_17 = arith.constant 8 : i32
    %47 = arith.muli %arg1, %c8_i32_17 : i32
    %c17_i32 = arith.constant 17 : i32
    %48 = arith.subi %c17_i32, %47 : i32
    %c128_i32_18 = arith.constant 128 : i32
    %49 = arith.muli %48, %c128_i32_18 : i32
    %c1_i32_19 = arith.constant 1 : i32
    %50 = vector.broadcast %c1_i32_19 : i32 to vector<1x1408xi32>
    %51 = arith.cmpi sge, %42, %50 : vector<1x1408xi32>
    %c17_i32_20 = arith.constant 17 : i32
    %52 = vector.broadcast %c17_i32_20 : i32 to vector<1x1408xi32>
    %53 = arith.cmpi slt, %42, %52 : vector<1x1408xi32>
    %54 = arith.andi %51, %53 : vector<1x1408xi1>
    %55 = vector.broadcast %46 : i32 to vector<1x1408xi32>
    %56 = arith.cmpi sge, %40, %55 : vector<1x1408xi32>
    %57 = arith.andi %54, %56 : vector<1x1408xi1>
    %58 = vector.broadcast %49 : i32 to vector<1x1408xi32>
    %59 = arith.cmpi slt, %40, %58 : vector<1x1408xi32>
    %60 = arith.andi %57, %59 : vector<1x1408xi1>
    %61 = arith.extui %60 : vector<1x1408xi1> to vector<1x1408xi32>
    %62 = arith.sitofp %61 : vector<1x1408xi32> to vector<1x1408xf32>
    %63 = vector.broadcast %62 : vector<1x1408xf32> to vector<16x1408xf32>
    %64 = arith.mulf %39, %63 : vector<16x1408xf32>
    %65 = arith.truncf %64 : vector<16x1408xf32> to vector<16x1408xbf16>
    %66 = vector.extract_strided_slice %65 {offsets = [0, 0], sizes = [16, 1024], strides = [1, 1]} : vector<16x1408xbf16> to vector<16x1024xbf16>
    %67 = vector.extract_strided_slice %65 {offsets = [0, 1], sizes = [16, 1024], strides = [1, 1]} : vector<16x1408xbf16> to vector<16x1024xbf16>
    %68 = vector.extract_strided_slice %65 {offsets = [0, 2], sizes = [16, 1024], strides = [1, 1]} : vector<16x1408xbf16> to vector<16x1024xbf16>
    %69 = tpu.concatenate %66, %67, %68 in 0 : vector<16x1024xbf16>, vector<16x1024xbf16>, vector<16x1024xbf16> -> vector<48x1024xbf16>
    %c0_21 = arith.constant 0 : index
    %c0_22 = arith.constant 0 : index
    %c0_23 = arith.constant 0 : index
    %70 = vector.load %arg5[%c0_21, %c0_22, %c0_23] : memref<3x4x48xbf16, #tpu.memory_space<vmem>>, vector<1x4x48xbf16>
    %71 = vector.shape_cast %70 : vector<1x4x48xbf16> to vector<4x48xbf16>
    %cst_24 = arith.constant dense<0.000000e+00> : vector<4x1024xf32>
    %72 = tpu.matmul %71, %69, %cst_24 {dimension_numbers = #tpu.dot_dimension_numbers<[1], [0], [0], [1], [0, 0, 1, 1], [], []>} : vector<4x48xbf16>, vector<48x1024xbf16>, vector<4x1024xf32> -> vector<4x1024xf32>
    %73 = vector.extract_strided_slice %65 {offsets = [0, 128], sizes = [16, 1024], strides = [1, 1]} : vector<16x1408xbf16> to vector<16x1024xbf16>
    %74 = vector.extract_strided_slice %65 {offsets = [0, 129], sizes = [16, 1024], strides = [1, 1]} : vector<16x1408xbf16> to vector<16x1024xbf16>
    %75 = vector.extract_strided_slice %65 {offsets = [0, 130], sizes = [16, 1024], strides = [1, 1]} : vector<16x1408xbf16> to vector<16x1024xbf16>
    %76 = tpu.concatenate %73, %74, %75 in 0 : vector<16x1024xbf16>, vector<16x1024xbf16>, vector<16x1024xbf16> -> vector<48x1024xbf16>
    %c1_25 = arith.constant 1 : index
    %c0_26 = arith.constant 0 : index
    %c0_27 = arith.constant 0 : index
    %77 = vector.load %arg5[%c1_25, %c0_26, %c0_27] : memref<3x4x48xbf16, #tpu.memory_space<vmem>>, vector<1x4x48xbf16>
    %78 = vector.shape_cast %77 : vector<1x4x48xbf16> to vector<4x48xbf16>
    %cst_28 = arith.constant dense<0.000000e+00> : vector<4x1024xf32>
    %79 = tpu.matmul %78, %76, %cst_28 {dimension_numbers = #tpu.dot_dimension_numbers<[1], [0], [0], [1], [0, 0, 1, 1], [], []>} : vector<4x48xbf16>, vector<48x1024xbf16>, vector<4x1024xf32> -> vector<4x1024xf32>
    %80 = arith.addf %72, %79 : vector<4x1024xf32>
    %81 = vector.extract_strided_slice %65 {offsets = [0, 256], sizes = [16, 1024], strides = [1, 1]} : vector<16x1408xbf16> to vector<16x1024xbf16>
    %82 = vector.extract_strided_slice %65 {offsets = [0, 257], sizes = [16, 1024], strides = [1, 1]} : vector<16x1408xbf16> to vector<16x1024xbf16>
    %83 = vector.extract_strided_slice %65 {offsets = [0, 258], sizes = [16, 1024], strides = [1, 1]} : vector<16x1408xbf16> to vector<16x1024xbf16>
    %84 = tpu.concatenate %81, %82, %83 in 0 : vector<16x1024xbf16>, vector<16x1024xbf16>, vector<16x1024xbf16> -> vector<48x1024xbf16>
    %c2_29 = arith.constant 2 : index
    %c0_30 = arith.constant 0 : index
    %c0_31 = arith.constant 0 : index
    %85 = vector.load %arg5[%c2_29, %c0_30, %c0_31] : memref<3x4x48xbf16, #tpu.memory_space<vmem>>, vector<1x4x48xbf16>
    %86 = vector.shape_cast %85 : vector<1x4x48xbf16> to vector<4x48xbf16>
    %cst_32 = arith.constant dense<0.000000e+00> : vector<4x1024xf32>
    %87 = tpu.matmul %86, %84, %cst_32 {dimension_numbers = #tpu.dot_dimension_numbers<[1], [0], [0], [1], [0, 0, 1, 1], [], []>} : vector<4x48xbf16>, vector<48x1024xbf16>, vector<4x1024xf32> -> vector<4x1024xf32>
    %88 = arith.addf %80, %87 : vector<4x1024xf32>
    %c0_33 = arith.constant 0 : index
    %c0_34 = arith.constant 0 : index
    %89 = vector.load %arg6[%c0_33, %c0_34] : memref<4x1xf32, #tpu.memory_space<vmem>>, vector<4x1xf32>
    %90 = vector.broadcast %89 : vector<4x1xf32> to vector<4x1024xf32>
    %91 = arith.addf %88, %90 : vector<4x1024xf32>
    %92 = vector.extract_strided_slice %10 {offsets = [0, 258], sizes = [4, 1024], strides = [1, 1]} : vector<4x1792xf32> to vector<4x1024xf32>
    %93 = arith.addf %91, %92 : vector<4x1024xf32>
    %c0_35 = arith.constant 0 : index
    %c0_36 = arith.constant 0 : index
    %c0_37 = arith.constant 0 : index
    %94 = vector.load %arg7[%c0_35, %c0_36, %c0_37] : memref<1x4x1024xf32, #tpu.memory_space<vmem>>, vector<1x4x1024xf32>
    %95 = vector.shape_cast %94 : vector<1x4x1024xf32> to vector<4x1024xf32>
    %96 = vector.shape_cast %93 : vector<4x1024xf32> to vector<1x4x1024xf32>
    tpu.vector_store %arg7[%c0_35, %c0_36, %c0_37], %96 {strides = array<i32>} : memref<1x4x1024xf32, #tpu.memory_space<vmem>>, vector<1x4x1024xf32>,
    return
  }
  func.func @transform_1(%arg0: i32, %arg1: i32) -> (i32, i32, i32) {
    %c0_i32 = arith.constant 0 : i32
    %c0_i32_0 = arith.constant 0 : i32
    %c0_i32_1 = arith.constant 0 : i32
    %c0_i32_2 = arith.constant 0 : i32
    return %c0_i32, %c0_i32_0, %c0_i32_1 : i32, i32, i32
  }
  func.func @transform_2(%arg0: i32, %arg1: i32) -> (i32, i32) {
    %c0_i32 = arith.constant 0 : i32
    %c0_i32_0 = arith.constant 0 : i32
    %c0_i32_1 = arith.constant 0 : i32
    return %c0_i32, %c0_i32_0 : i32, i32
  }
  func.func @transform_3(%arg0: i32, %arg1: i32) -> (i32, i32, i32) {
    %c0_i32 = arith.constant 0 : i32
    %c0_i32_0 = arith.constant 0 : i32
    %c0_i32_1 = arith.constant 0 : i32
    %c0_i32_2 = arith.constant 0 : i32
    return %c0_i32, %c0_i32_0, %c0_i32_1 : i32, i32, i32
  }
  func.func @transform_4(%arg0: i32, %arg1: i32) -> (i32, i32) {
    %c0_i32 = arith.constant 0 : i32
    %c0_i32_0 = arith.constant 0 : i32
    %c0_i32_1 = arith.constant 0 : i32
    return %c0_i32, %c0_i32_0 : i32, i32
  }
  func.func @transform_5(%arg0: i32, %arg1: i32) -> (i32, i32, i32) {
    %c0_i32 = arith.constant 0 : i32
    %c0_i32_0 = arith.constant 0 : i32
    return %arg0, %c0_i32, %arg1 : i32, i32, i32
  }
}

</mosaic_0001>

<llo_original>
// kernel: tpu_custom_call.1
$region0: #{tpu_custom_call.1}
  #allocation0 [shape = 'u32[]', space=smem, size = 0x4, offset = 0x4, fixed_abs, tag = 'smem constant byte address 0x4 - core index']
  #allocation1 [shape = 'u32[144,128]{1,0:T(1,128)}', space=vmem, size = 0x12000, scoped, tag = 'internal scratch']
  #allocation2 [shape = 'f32[4,1792]{1,0:T(4,128)}', space=vmem, size = 0x7000, scoped, tag = 'scratch operand']
  #allocation3 [shape = 's32[1]{0}', space=sflag, size = 0x4, scoped, tag = 'scratch operand']
  #allocation13 [shape = 's32[]', space=sflag, size = 0x4, offset = 0, fixed_abs, tag = 'sflag constant byte address 0x0 - dummy sync flag']
  #allocation14 [shape = 's32[]', space=sflag, size = 0x4, offset = 0, fixed_abs, tag = 'sflag constant byte address 0x0 - dummy sync flag']
  #allocation15 [shape = 'u32[]', space=smem, size = 0x4, offset = 0x44, fixed_abs, tag = 'smem constant byte address 0x44 - assertion arg 0']
  #allocation16 [shape = 'u32[]', space=smem, size = 0x4, offset = 0x48, fixed_abs, tag = 'smem constant byte address 0x48 - assertion arg 1']
  %s0 = inlined_call_operand.hbm [shape: f32[2,4,2816], index: 0, kind: input, shape index: {}]
  %s1 = inlined_call_operand.hbm [shape: bf16[3,16,12], index: 1, kind: input, shape index: {}]
  %s2 = inlined_call_operand.hbm [shape: f32[16,1], index: 2, kind: input, shape index: {}]
  %s3 = inlined_call_operand.hbm [shape: bf16[3,4,48], index: 3, kind: input, shape index: {}]
  %s4 = inlined_call_operand.hbm [shape: f32[4,1], index: 4, kind: input, shape index: {}]
  %s5 = inlined_call_operand.hbm [shape: f32[2,4,2048], index: 5, kind: output, shape index: {}]
  %s6 = sld [smem:[#allocation0]]
  $region69: #{tpu_custom_call.1} parent=0
    _
  %s8 = ssub.s32 1, %s6
  %s9 = scalar_select 0, %s8, %s6
  $region1: #{tpu_custom_call.1} parent=0
    #allocation4 [shape = 'u8[12288]{0}', space=vmem, size = 0x3000, scoped, tag = 'input window, operand 1, single buffered']
    #allocation5 [shape = 's32[2]{0}', space=sflag, size = 0x8, scoped, tag = 'scoped memory for tpu_custom_call.1']
    #allocation6 [shape = 's32[2]{0}', space=sflag, size = 0x8, scoped, tag = 'scoped memory for tpu_custom_call.1']
    #allocation7 [shape = 'u8[8192]{0}', space=vmem, size = 0x2000, scoped, tag = 'input window, operand 2, single buffered']
    #allocation8 [shape = 's32[1]{0}', space=sflag, size = 0x4, scoped, tag = 'scoped memory for tpu_custom_call.1']
    #allocation9 [shape = 'u8[3072]{0}', space=vmem, size = 0xc00, scoped, tag = 'input window, operand 3, single buffered']
    #allocation10 [shape = 'u8[2048]{0}', space=vmem, size = 0x800, scoped, tag = 'input window, operand 4, single buffered']
    #allocation11 [shape = 's32[1]{0}', space=sflag, size = 0x4, scoped, tag = 'scoped memory for tpu_custom_call.1']
    #allocation12 [shape = 'u8[32768]{0}', space=vmem, size = 0x8000, scoped, tag = 'output window, operand 0']
    %10 = vsyncpa [#allocation5], 0
    %11 = vsyncpa [#allocation8], 0
    %12 = vsyncpa [#allocation11], 0
    %13 = vsyncpa [#allocation6], 0
    %s14 = scalar_lea.sflag [#allocation6], 1
    %15 = vsyncpa %s14, 0
    loop: start=0, step=1, limit=6
    $region2: #{tpu_custom_call.1} parent=1 // loop_pre_header
      _
    $region3: #{tpu_custom_call.1} parent=1 // loop_header
      %s17 = sphi 0, %s21
      %p18 = scmp.ge.s32.totalorder %s17, 6
      %s24 = sphi 0, %s36
      %s25 = sphi 0, %s32
      %s26 = sphi 0, %s24
      %s27 = sphi 0, %s25
      %s28 = sphi 0, %s26
      %s29 = sphi 0, %s27
      %s37 = sphi 0, %s37
      %s39 = sphi 0, %s37
      %s40 = sphi 0, %s39
      %s54 = sphi 0, %s40
      %s58 = sphi 0, %s58
      %s60 = sphi 0, %s58
      %s61 = sphi 0, %s60
      %s75 = sphi 0, %s61
      %s79 = sphi 0, %s79
      %s81 = sphi 0, %s79
      %s82 = sphi 0, %s81
      %s96 = sphi 0, %s82
      %s100 = sphi 0, %s100
      %s102 = sphi 0, %s100
      %s103 = sphi 0, %s102
      %s117 = sphi 0, %s103
      %s125 = sphi 0, %s127
      %s128 = sphi 0, %s125
      %s129 = sphi 0, %s128
      %s145 = sphi 0, %s129
    $region4: #{tpu_custom_call.1} parent=1 // loop_header_branch
      %20 = sbr.rel (%p18) target = $region8
    $region5: #{tpu_custom_call.1} parent=1 // loop_body
      %s22 = ssub.s32 %s17, 1
      %s23 = ssub.s32 %s17, 2
      %s30 = sadd.s32 1, %s25
      %p31 = scmp.ge.s32.totalorder %s30, 2
      %s32 = scalar_select %p31, 0, %s30
      %s33 = sadd.s32 1, %s24
      %s34 = scalar_select %p31, %s33, %s24
      %p35 = scmp.ge.s32.totalorder %s34, 2
      %s36 = scalar_select %p35, 0, %s34
      %s38 = sadd.s32 %s37, 1
      %p41 = scmp.eq.s32.totalorder %s17, 3
      %p42 = scmp.ne.s32.totalorder %s37, %s39
      %p43 = scmp.eq.s32.totalorder %s17, 0
      %p44 = por %p42, %p43
      %p45 = scmp.ne.s32.totalorder %s37, %s39
      %p46 = scmp.eq.s32.totalorder %s22, 3
      %p47 = por %p45, %p46
      %p48 = scmp.ne.s32.totalorder %s39, %s40
      %p49 = scmp.eq.s32.totalorder %s22, 0
      %p50 = por %p48, %p49
      %p51 = scmp.ne.s32.totalorder %s39, %s40
      %p52 = scmp.eq.s32.totalorder %s23, 3
      %p53 = por %p51, %p52
      %p55 = scmp.ne.s32.totalorder %s40, %s54
      %p56 = scmp.eq.s32.totalorder %s23, 0
      %p57 = por %p55, %p56
      %s59 = sadd.s32 %s58, 1
      %p62 = scmp.eq.s32.totalorder %s17, 3
      %p63 = scmp.ne.s32.totalorder %s58, %s60
      %p64 = scmp.eq.s32.totalorder %s17, 0
      %p65 = por %p63, %p64
      %p66 = scmp.ne.s32.totalorder %s58, %s60
      %p67 = scmp.eq.s32.totalorder %s22, 3
      %p68 = por %p66, %p67
      %p69 = scmp.ne.s32.totalorder %s60, %s61
      %p70 = scmp.eq.s32.totalorder %s22, 0
      %p71 = por %p69, %p70
      %p72 = scmp.ne.s32.totalorder %s60, %s61
      %p73 = scmp.eq.s32.totalorder %s23, 3
      %p74 = por %p72, %p73
      %p76 = scmp.ne.s32.totalorder %s61, %s75
      %p77 = scmp.eq.s32.totalorder %s23, 0
      %p78 = por %p76, %p77
      %s80 = sadd.s32 %s79, 1
      %p83 = scmp.eq.s32.totalorder %s17, 3
      %p84 = scmp.ne.s32.totalorder %s79, %s81
      %p85 = scmp.eq.s32.totalorder %s17, 0
      %p86 = por %p84, %p85
      %p87 = scmp.ne.s32.totalorder %s79, %s81
      %p88 = scmp.eq.s32.totalorder %s22, 3
      %p89 = por %p87, %p88
      %p90 = scmp.ne.s32.totalorder %s81, %s82
      %p91 = scmp.eq.s32.totalorder %s22, 0
      %p92 = por %p90, %p91
      %p93 = scmp.ne.s32.totalorder %s81, %s82
      %p94 = scmp.eq.s32.totalorder %s23, 3
      %p95 = por %p93, %p94
      %p97 = scmp.ne.s32.totalorder %s82, %s96
      %p98 = scmp.eq.s32.totalorder %s23, 0
      %p99 = por %p97, %p98
      %s101 = sadd.s32 %s100, 1
      %p104 = scmp.eq.s32.totalorder %s17, 3
      %p105 = scmp.ne.s32.totalorder %s100, %s102
      %p106 = scmp.eq.s32.totalorder %s17, 0
      %p107 = por %p105, %p106
      %p108 = scmp.ne.s32.totalorder %s100, %s102
      %p109 = scmp.eq.s32.totalorder %s22, 3
      %p110 = por %p108, %p109
      %p111 = scmp.ne.s32.totalorder %s102, %s103
      %p112 = scmp.eq.s32.totalorder %s22, 0
      %p113 = por %p111, %p112
      %p114 = scmp.ne.s32.totalorder %s102, %s103
      %p115 = scmp.eq.s32.totalorder %s23, 3
      %p116 = por %p114, %p115
      %p118 = scmp.ne.s32.totalorder %s103, %s117
      %p119 = scmp.eq.s32.totalorder %s23, 0
      %p120 = por %p118, %p119
      %s121 = ssub.s32 %s24, %s36
      %s122 = ssub.s32 %s25, %s32
      %s123 = sor.u32 %s121, %s122
      %p124 = scmp.eq.s32.totalorder %s123, 0
      %s126 = sadd.s32 %s125, 1
      %s127 = scalar_select %p124, %s125, %s126
      %p130 = pneg %p124
      %p131 = scmp.eq.s32.totalorder %s17, 3
      %p132 = por %p130, %p131
      %p133 = scmp.ne.s32.totalorder %s125, %s128
      %p134 = scmp.eq.s32.totalorder %s17, 0
      %p135 = por %p133, %p134
      %p136 = scmp.ne.s32.totalorder %s125, %s128
      %p137 = scmp.eq.s32.totalorder %s22, 3
      %p138 = por %p136, %p137
      %p139 = scmp.ne.s32.totalorder %s128, %s129
      %p140 = scmp.eq.s32.totalorder %s22, 0
      %p141 = por %p139, %p140
      %p142 = scmp.ne.s32.totalorder %s128, %s129
      %p143 = scmp.eq.s32.totalorder %s23, 3
      %p144 = por %p142, %p143
      %p146 = scmp.ne.s32.totalorder %s129, %s145
      %p147 = scmp.eq.s32.totalorder %s23, 0
      %p148 = por %p146, %p147
      %p149 = scmp.le.s32.totalorder 1, %s17
      %p150 = scmp.lt.s32.totalorder %s17, 5
      %p151 = pnand %p149, %p150
      %p152 = pneg %p151
      // Predicated region
      $region9: #{tpu_custom_call.1} parent=5 // pred_check
        _
      $region10: #{tpu_custom_call.1} parent=5 // pred_check_branch
        %154 = sbr.rel (%p151) target = $region12
      $region11: #{tpu_custom_call.1} parent=5 // pred_region
        %s155 = ssub.s32 %s17, 1
        // Predicated region
        $region13: #{tpu_custom_call.1} parent=11 // pred_check
          %p156 = pneg %p50
        $region14: #{tpu_custom_call.1} parent=11 // pred_check_branch
          %158 = sbr.rel (%p156) target = $region16
        $region15: #{tpu_custom_call.1} parent=11 // pred_region
          %s160 = ssub.s32 384, 384
          %161 = vsyncadd [#allocation5], %s160
          %s162 = sshll.u32 [#allocation4], 4
          %s163 = int_to_ptr.vmem [resolvable:$true] %s162
          %168 = dma.hbm_to_vmem [thread:$0]  %s1, 384, %s163, [#allocation5], 64, 64, 4
        $region16: #{tpu_custom_call.1} parent=11 // pred_fallthru
          _
        // Predicated region
        $region17: #{tpu_custom_call.1} parent=11 // pred_check
          %p169 = pneg %p71
        $region18: #{tpu_custom_call.1} parent=11 // pred_check_branch
          %171 = sbr.rel (%p169) target = $region20
        $region19: #{tpu_custom_call.1} parent=11 // pred_region
          %s173 = ssub.s32 256, 256
          %174 = vsyncadd [#allocation8], %s173
          %s175 = sshll.u32 [#allocation7], 4
          %s176 = int_to_ptr.vmem [resolvable:$true] %s175
          %181 = dma.hbm_to_vmem [thread:$0]  %s2, 256, %s176, [#allocation8], 128, 128, 8
        $region20: #{tpu_custom_call.1} parent=11 // pred_fallthru
          _
        // Predicated region
        $region21: #{tpu_custom_call.1} parent=11 // pred_check
          %p182 = pneg %p92
        $region22: #{tpu_custom_call.1} parent=11 // pred_check_branch
          %184 = sbr.rel (%p182) target = $region24
        $region23: #{tpu_custom_call.1} parent=11 // pred_region
          %s186 = ssub.s32 96, 96
          %187 = vsyncadd [#allocation8], %s186
          %s188 = sshll.u32 [#allocation9], 4
          %s189 = int_to_ptr.vmem [resolvable:$true] %s188
          %194 = dma.hbm_to_vmem [thread:$0]  %s3, 96, %s189, [#allocation8], 32, 32, 2
        $region24: #{tpu_custom_call.1} parent=11 // pred_fallthru
          _
        // Predicated region
        $region25: #{tpu_custom_call.1} parent=11 // pred_check
          %p195 = pneg %p113
        $region26: #{tpu_custom_call.1} parent=11 // pred_check_branch
          %197 = sbr.rel (%p195) target = $region28
        $region27: #{tpu_custom_call.1} parent=11 // pred_region
          %s199 = ssub.s32 64, 64
          %200 = vsyncadd [#allocation11], %s199
          %s202 = sshll.u32 [#allocation10], 4
          %s203 = int_to_ptr.vmem [resolvable:$true] %s202
          %205 = dma.hbm_to_vmem [thread:$0]  %s4, 64, %s203, [#allocation11]
        $region28: #{tpu_custom_call.1} parent=11 // pred_fallthru
          _
      $region12: #{tpu_custom_call.1} parent=5 // pred_fallthru
        _
      %p206 = scmp.lt.s32.totalorder %s17, 4
      // Predicated region
      $region29: #{tpu_custom_call.1} parent=5 // pred_check
        %p207 = pneg %p206
      $region30: #{tpu_custom_call.1} parent=5 // pred_check_branch
        %209 = sbr.rel (%p207) target = $region32
      $region31: #{tpu_custom_call.1} parent=5 // pred_region
        _
      $region32: #{tpu_custom_call.1} parent=5 // pred_fallthru
        _
      %p210 = scmp.le.s32.totalorder 1, %s17
      %p211 = scmp.lt.s32.totalorder %s17, 5
      %p212 = pnand %p210, %p211
      %p213 = pneg %p212
      // Predicated region
      $region33: #{tpu_custom_call.1} parent=5 // pred_check
        _
      $region34: #{tpu_custom_call.1} parent=5 // pred_check_branch
        %215 = sbr.rel (%p212) target = $region36
      $region35: #{tpu_custom_call.1} parent=5 // pred_region
        %s216 = ssub.s32 %s17, 1
        // Predicated region
        $region37: #{tpu_custom_call.1} parent=35 // pred_check
          %p217 = pneg %p50
        $region38: #{tpu_custom_call.1} parent=35 // pred_check_branch
          %219 = sbr.rel (%p217) target = $region40
        $region39: #{tpu_custom_call.1} parent=35 // pred_region
          %220 = dma.done [#allocation5], 384
        $region40: #{tpu_custom_call.1} parent=35 // pred_fallthru
          _
        // Predicated region
        $region41: #{tpu_custom_call.1} parent=35 // pred_check
          %p221 = pneg %p71
        $region42: #{tpu_custom_call.1} parent=35 // pred_check_branch
          %223 = sbr.rel (%p221) target = $region44
        $region43: #{tpu_custom_call.1} parent=35 // pred_region
          %224 = dma.done [#allocation8], 256
        $region44: #{tpu_custom_call.1} parent=35 // pred_fallthru
          _
        // Predicated region
        $region45: #{tpu_custom_call.1} parent=35 // pred_check
          %p225 = pneg %p92
        $region46: #{tpu_custom_call.1} parent=35 // pred_check_branch
          %227 = sbr.rel (%p225) target = $region48
        $region47: #{tpu_custom_call.1} parent=35 // pred_region
          %228 = dma.done [#allocation8], 96
        $region48: #{tpu_custom_call.1} parent=35 // pred_fallthru
          _
        // Predicated region
        $region49: #{tpu_custom_call.1} parent=35 // pred_check
          %p229 = pneg %p113
        $region50: #{tpu_custom_call.1} parent=35 // pred_check_branch
          %231 = sbr.rel (%p229) target = $region52
        $region51: #{tpu_custom_call.1} parent=35 // pred_region
          %232 = dma.done [#allocation11], 64
        $region52: #{tpu_custom_call.1} parent=35 // pred_fallthru
          _
        %p233 = pneg %p50
        %p234 = pneg %p47
        %p235 = pneg %p71
        %p236 = pneg %p68
        %p237 = pneg %p92
        %p238 = pneg %p89
        %p239 = pneg %p113
        %p240 = pneg %p110
        %p241 = pneg %p141
        %p242 = pneg %p138
        %s243 = sand.u32 %s128, 1
        %s244 = scalar_lea.sflag [#allocation6], %s243
        %s245 = sand.u32 %s128, 1
        %s246 = smul.addr %s245, 32
        %s247 = scalar_lea.vmem [#allocation12], %s246
        %s248 = smul.u32 8, %s27
        %s250 = smul.u32 %s27, 1024
        %s251 = sshra.s32 %s250, 7
        %s252 = sand.u32 %s250, 127
        %s253 = smul.u32 %s26, 22
        %s254 = sadd.s32 %s251, %s253
        %s255 = smul.addr %s254, 64
        %s256 = scalar_lea.hbm %s0, %s255
        // Predicated region
        $region53: #{tpu_custom_call.1} parent=35 // pred_check
          _
        $region54: #{tpu_custom_call.1} parent=35 // pred_check_branch
          %258 = sbr.rel target = $region56
        $region55: #{tpu_custom_call.1} parent=35 // pred_region
          %259 = sst [smem:[#allocation15]] [#allocation14]
          %260 = sst [smem:[#allocation16]] [#allocation13]
        $region56: #{tpu_custom_call.1} parent=35 // pred_fallthru
          _
        %262 = shalt.err (0)
        %s264 = sshll.u32 [#allocation2], 4
        %s265 = int_to_ptr.vmem [resolvable:$true] %s264
        %267 = dma.hbm_to_vmem [thread:$0]  %s256, 896, %s265, [#allocation3]
        %s268 = smul.u32 4, 1
        %s269 = smul.u32 %s268, 14
        %s270 = sshll.u32 %s269, 4
        %271 = dma.done [#allocation3], %s270
        %v272 = vld [vmem:[#allocation2] sm:$0xff]
        %v273 = vld [vmem:[#allocation2 + $0x8] sm:$0xff]
        %v274 = vld [vmem:[#allocation2 + $0x10] sm:$0xff]
        %v275 = vld [vmem:[#allocation2 + $0x18] sm:$0xff]
        %v276 = vld [vmem:[#allocation2 + $0x20] sm:$0xff]
        %v277 = vld [vmem:[#allocation2 + $0x28] sm:$0xff]
        %v278 = vld [vmem:[#allocation2 + $0x30] sm:$0xff]
        %v286 = vcombine.high %v272, %v272
        %v287 = vcombine.high %v273, %v273
        %v288 = vcombine.high %v274, %v274
        %v289 = vcombine.high %v275, %v275
        %v290 = vcombine.high %v276, %v276
        %v291 = vcombine.high %v277, %v277
        %v292 = vcombine.high %v278, %v278
        %v300 = vpack.c.bf16 %v272, %v272
        %v301 = vpack.c.bf16 %v286, %v286
        %v302 = vpack.c.bf16 %v273, %v273
        %v303 = vpack.c.bf16 %v287, %v287
        %v304 = vpack.c.bf16 %v274, %v274
        %v305 = vpack.c.bf16 %v288, %v288
        %v306 = vpack.c.bf16 %v275, %v275
        %v307 = vpack.c.bf16 %v289, %v289
        %v308 = vpack.c.bf16 %v276, %v276
        %v309 = vpack.c.bf16 %v290, %v290
        %v310 = vpack.c.bf16 %v277, %v277
        %v311 = vpack.c.bf16 %v291, %v291
        %v312 = vpack.c.bf16 %v278, %v278
        %v313 = vpack.c.bf16 %v292, %v292
        %v326 = vrot.slane %v300, 6
        %v327 = vrot.slane %v301, 6
        %v328 = vrot.slane %v302, 6
        %v329 = vrot.slane %v303, 6
        %v330 = vrot.slane %v304, 6
        %v331 = vrot.slane %v305, 6
        %v332 = vrot.slane %v306, 6
        %v333 = vrot.slane %v307, 6
        %v334 = vrot.slane %v308, 6
        %v335 = vrot.slane %v309, 6
        %v336 = vrot.slane %v310, 6
        %v337 = vrot.slane %v311, 6
        %338 = vrot.lane.b32.xlu0 %v326, 127
        %v339 = vpop.permute.xlu0 %338
        %340 = vrot.lane.b32.xlu0 %v327, 127
        %v341 = vpop.permute.xlu0 %340
        %342 = vrot.lane.b32.xlu0 %v328, 127
        %v343 = vpop.permute.xlu0 %342
        %344 = vrot.lane.b32.xlu0 %v329, 127
        %v345 = vpop.permute.xlu0 %344
        %346 = vrot.lane.b32.xlu0 %v330, 127
        %v347 = vpop.permute.xlu0 %346
        %348 = vrot.lane.b32.xlu0 %v331, 127
        %v349 = vpop.permute.xlu0 %348
        %350 = vrot.lane.b32.xlu0 %v332, 127
        %v351 = vpop.permute.xlu0 %350
        %352 = vrot.lane.b32.xlu0 %v333, 127
        %v353 = vpop.permute.xlu0 %352
        %354 = vrot.lane.b32.xlu0 %v334, 127
        %v355 = vpop.permute.xlu0 %354
        %356 = vrot.lane.b32.xlu0 %v335, 127
        %v357 = vpop.permute.xlu0 %356
        %358 = vrot.lane.b32.xlu0 %v336, 127
        %v359 = vpop.permute.xlu0 %358
        %360 = vrot.lane.b32.xlu0 %v337, 127
        %v361 = vpop.permute.xlu0 %360
        %vm362 = vcmask 1039360
        %v363 = vsel %vm362, %v339, %v341
        %v364 = vsel %vm362, %v341, %v343
        %v365 = vsel %vm362, %v343, %v345
        %v366 = vsel %vm362, %v345, %v347
        %v367 = vsel %vm362, %v347, %v349
        %v368 = vsel %vm362, %v349, %v351
        %v369 = vsel %vm362, %v351, %v353
        %v370 = vsel %vm362, %v353, %v355
        %v371 = vsel %vm362, %v355, %v357
        %v372 = vsel %vm362, %v357, %v359
        %v373 = vsel %vm362, %v359, %v361
        %v374 = vrot.slane %v300, 4
        %v375 = vrot.slane %v301, 4
        %v376 = vrot.slane %v302, 4
        %v377 = vrot.slane %v303, 4
        %v378 = vrot.slane %v304, 4
        %v379 = vrot.slane %v305, 4
        %v380 = vrot.slane %v306, 4
        %v381 = vrot.slane %v307, 4
        %v382 = vrot.slane %v308, 4
        %v383 = vrot.slane %v309, 4
        %v384 = vrot.slane %v310, 4
        %v385 = vrot.slane %v311, 4
        %386 = vrot.lane.b32.xlu0 %v374, 126
        %v387 = vpop.permute.xlu0 %386
        %388 = vrot.lane.b32.xlu0 %v375, 126
        %v389 = vpop.permute.xlu0 %388
        %390 = vrot.lane.b32.xlu0 %v376, 126
        %v391 = vpop.permute.xlu0 %390
        %392 = vrot.lane.b32.xlu0 %v377, 126
        %v393 = vpop.permute.xlu0 %392
        %394 = vrot.lane.b32.xlu0 %v378, 126
        %v395 = vpop.permute.xlu0 %394
        %396 = vrot.lane.b32.xlu0 %v379, 126
        %v397 = vpop.permute.xlu0 %396
        %398 = vrot.lane.b32.xlu0 %v380, 126
        %v399 = vpop.permute.xlu0 %398
        %400 = vrot.lane.b32.xlu0 %v381, 126
        %v401 = vpop.permute.xlu0 %400
        %402 = vrot.lane.b32.xlu0 %v382, 126
        %v403 = vpop.permute.xlu0 %402
        %404 = vrot.lane.b32.xlu0 %v383, 126
        %v405 = vpop.permute.xlu0 %404
        %406 = vrot.lane.b32.xlu0 %v384, 126
        %v407 = vpop.permute.xlu0 %406
        %408 = vrot.lane.b32.xlu0 %v385, 126
        %v409 = vpop.permute.xlu0 %408
        %vm410 = vcmask 1031168
        %v411 = vsel %vm410, %v387, %v389
        %v412 = vsel %vm410, %v389, %v391
        %v413 = vsel %vm410, %v391, %v393
        %v414 = vsel %vm410, %v393, %v395
        %v415 = vsel %vm410, %v395, %v397
        %v416 = vsel %vm410, %v397, %v399
        %v417 = vsel %vm410, %v399, %v401
        %v418 = vsel %vm410, %v401, %v403
        %v419 = vsel %vm410, %v403, %v405
        %v420 = vsel %vm410, %v405, %v407
        %v421 = vsel %vm410, %v407, %v409
        %vm422 = vcmask 1041408
        %v425 = vsel %vm422, %v300, %v363
        %v428 = vsel %vm422, %v301, %v364
        %v431 = vsel %vm422, %v302, %v365
        %v434 = vsel %vm422, %v303, %v366
        %v437 = vsel %vm422, %v304, %v367
        %v440 = vsel %vm422, %v305, %v368
        %v443 = vsel %vm422, %v306, %v369
        %v446 = vsel %vm422, %v307, %v370
        %v449 = vsel %vm422, %v308, %v371
        %v452 = vsel %vm422, %v309, %v372
        %v455 = vsel %vm422, %v310, %v373
        %vm456 = vcmask 1043456
        %v458 = vsel %vm456, %v425, %v411
        %v460 = vsel %vm456, %v428, %v412
        %v462 = vsel %vm456, %v431, %v413
        %v464 = vsel %vm456, %v434, %v414
        %v466 = vsel %vm456, %v437, %v415
        %v468 = vsel %vm456, %v440, %v416
        %v470 = vsel %vm456, %v443, %v417
        %v472 = vsel %vm456, %v446, %v418
        %v474 = vsel %vm456, %v449, %v419
        %v476 = vsel %vm456, %v452, %v420
        %v478 = vsel %vm456, %v455, %v421
        %v479 = vld [vmem:[#allocation4] sm:$0xf]
        %v480 = vld [vmem:[#allocation4 + $0x4] sm:$0xf]
        %v482 = vrot.slane %v312, 6
        %483 = vrot.lane.b32.xlu0 %v482, 127
        %v484 = vpop.permute.xlu0 %483
        %v485 = vsel %vm362, %v361, %v484
        %v486 = vrot.slane %v312, 4
        %487 = vrot.lane.b32.xlu0 %v486, 126
        %v488 = vpop.permute.xlu0 %487
        %v489 = vsel %vm410, %v409, %v488
        %v492 = vsel %vm422, %v311, %v485
        %v494 = vsel %vm456, %v492, %v489
        %s495 = scalar_lea.vmem [#allocation4], 8
        %v496 = vld [vmem:[%s495] sm:$0xf]
        %v497 = vld [vmem:[%s495 + $0x4] sm:$0xf]
        %v500 = vunpack.c.l.b16 %v496
        %v501 = vunpack.c.l.b16 %v497
        %v502 = vpack.c.b16 %v501, %v500
        %vm503 = vcmask 97280
        %v505 = vsel %vm503, %v502, 0
        %vm507 = vcmask 1045504
        %v508 = vsel %vm507, %v460, 0
        %v510 = vsel %vm507, %v462, 0
        %v512 = vsel %vm507, %v464, 0
        %v514 = vsel %vm507, %v466, 0
        %v516 = vsel %vm507, %v468, 0
        %v518 = vsel %vm507, %v470, 0
        %v520 = vsel %vm507, %v472, 0
        %v522 = vsel %vm507, %v474, 0
        %v524 = vsel %vm507, %v476, 0
        %v526 = vsel %vm507, %v478, 0
        %v528 = vsel %vm507, %v494, 0
        %530 = vmatprep.subr.bf16.mxu0 %v510
        %531 = vmatpush1.bf16.msra.mxu0 %v508
        %532 = vmatprep.subr.bf16.mxu0 0
        %533 = vmatpush1.bf16.msra.mxu0 0
        %534 = vmatprep.subr.bf16.mxu0 0
        %535 = vmatpush1.bf16.msra.mxu0 0
        %536 = vmatprep.subr.bf16.mxu0 0
        %537 = vmatpush1.bf16.msra.mxu0 0
        %538 = vmatprep.subr.bf16.mxu0 0
        %539 = vmatpush1.bf16.msra.mxu0 0
        %540 = vmatprep.subr.bf16.mxu0 0
        %541 = vmatpush1.bf16.msra.mxu0 0
        %542 = vmatprep.subr.bf16.mxu0 0
        %543 = vmatpush1.bf16.msra.mxu0 0
        %544 = vmatprep.subr.bf16.mxu0 0
        %545 = vmatpush1.bf16.msra.mxu0 0
        %546 = vmatprep.subr.bf16.mxu0 0
        %547 = vmatpush1.bf16.msra.mxu0 0
        %548 = vmatprep.subr.bf16.mxu0 0
        %549 = vmatpush1.bf16.msra.mxu0 0
        %550 = vmatprep.subr.bf16.mxu0 0
        %551 = vmatpush1.bf16.msra.mxu0 0
        %552 = vmatprep.subr.bf16.mxu0 0
        %553 = vmatpush1.bf16.msra.mxu0 0
        %554 = vmatprep.subr.bf16.mxu0 0
        %555 = vmatpush1.bf16.msra.mxu0 0
        %556 = vmatprep.subr.bf16.mxu0 0
        %557 = vmatpush1.bf16.msra.mxu0 0
        %558 = vmatprep.subr.bf16.mxu0 0
        %559 = vmatpush1.bf16.msra.mxu0 0
        %560 = vmatprep.subr.bf16.mxu0 0
        %561 = vmatpush1.bf16.msra.mxu0 0
        %562 = vmatprep.mubr.bf16.mxu0 0
        %563 = vmatmul.mubr.bf16.gmra.mrb[0].mxu0 %v505
        %v564 = vpop.f32.mrb[0].mxu0
        %v565 = vadd.f32 0.0, %v564
        %v566 = vpop.f32.mrb[0].mxu0
        %v567 = vadd.f32 0.0, %v566
        %v568 = vpop.f32.mrb[0].mxu0
        %v569 = vadd.f32 0.0, %v568
        %v570 = vpop.f32.mrb[0].mxu0
        %v571 = vadd.f32 0.0, %v570
        %572 = vdwg.mxu0
        %573 = vmatprep.subr.bf16.mxu0 %v514
        %574 = vmatpush1.bf16.msra.mxu0 %v512
        %575 = vmatprep.subr.bf16.mxu0 0
        %576 = vmatpush1.bf16.msra.mxu0 0
        %577 = vmatprep.subr.bf16.mxu0 0
        %578 = vmatpush1.bf16.msra.mxu0 0
        %579 = vmatprep.subr.bf16.mxu0 0
        %580 = vmatpush1.bf16.msra.mxu0 0
        %581 = vmatprep.subr.bf16.mxu0 0
        %582 = vmatpush1.bf16.msra.mxu0 0
        %583 = vmatprep.subr.bf16.mxu0 0
        %584 = vmatpush1.bf16.msra.mxu0 0
        %585 = vmatprep.subr.bf16.mxu0 0
        %586 = vmatpush1.bf16.msra.mxu0 0
        %587 = vmatprep.subr.bf16.mxu0 0
        %588 = vmatpush1.bf16.msra.mxu0 0
        %589 = vmatprep.subr.bf16.mxu0 0
        %590 = vmatpush1.bf16.msra.mxu0 0
        %591 = vmatprep.subr.bf16.mxu0 0
        %592 = vmatpush1.bf16.msra.mxu0 0
        %593 = vmatprep.subr.bf16.mxu0 0
        %594 = vmatpush1.bf16.msra.mxu0 0
        %595 = vmatprep.subr.bf16.mxu0 0
        %596 = vmatpush1.bf16.msra.mxu0 0
        %597 = vmatprep.subr.bf16.mxu0 0
        %598 = vmatpush1.bf16.msra.mxu0 0
        %599 = vmatprep.subr.bf16.mxu0 0
        %600 = vmatpush1.bf16.msra.mxu0 0
        %601 = vmatprep.subr.bf16.mxu0 0
        %602 = vmatpush1.bf16.msra.mxu0 0
        %603 = vmatprep.subr.bf16.mxu0 0
        %604 = vmatpush1.bf16.msra.mxu0 0
        %605 = vmatprep.mubr.bf16.mxu0 0
        %606 = vmatmul.mubr.bf16.gmra.mrb[0].mxu0 %v505
        %v607 = vpop.f32.mrb[0].mxu0
        %v608 = vadd.f32 0.0, %v607
        %v609 = vpop.f32.mrb[0].mxu0
        %v610 = vadd.f32 0.0, %v609
        %v611 = vpop.f32.mrb[0].mxu0
        %v612 = vadd.f32 0.0, %v611
        %v613 = vpop.f32.mrb[0].mxu0
        %v614 = vadd.f32 0.0, %v613
        %615 = vdwg.mxu0
        %616 = vmatprep.subr.bf16.mxu0 %v518
        %617 = vmatpush1.bf16.msra.mxu0 %v516
        %618 = vmatprep.subr.bf16.mxu0 0
        %619 = vmatpush1.bf16.msra.mxu0 0
        %620 = vmatprep.subr.bf16.mxu0 0
        %621 = vmatpush1.bf16.msra.mxu0 0
        %622 = vmatprep.subr.bf16.mxu0 0
        %623 = vmatpush1.bf16.msra.mxu0 0
        %624 = vmatprep.subr.bf16.mxu0 0
        %625 = vmatpush1.bf16.msra.mxu0 0
        %626 = vmatprep.subr.bf16.mxu0 0
        %627 = vmatpush1.bf16.msra.mxu0 0
        %628 = vmatprep.subr.bf16.mxu0 0
        %629 = vmatpush1.bf16.msra.mxu0 0
        %630 = vmatprep.subr.bf16.mxu0 0
        %631 = vmatpush1.bf16.msra.mxu0 0
        %632 = vmatprep.subr.bf16.mxu0 0
        %633 = vmatpush1.bf16.msra.mxu0 0
        %634 = vmatprep.subr.bf16.mxu0 0
        %635 = vmatpush1.bf16.msra.mxu0 0
        %636 = vmatprep.subr.bf16.mxu0 0
        %637 = vmatpush1.bf16.msra.mxu0 0
        %638 = vmatprep.subr.bf16.mxu0 0
        %639 = vmatpush1.bf16.msra.mxu0 0
        %640 = vmatprep.subr.bf16.mxu0 0
        %641 = vmatpush1.bf16.msra.mxu0 0
        %642 = vmatprep.subr.bf16.mxu0 0
        %643 = vmatpush1.bf16.msra.mxu0 0
        %644 = vmatprep.subr.bf16.mxu0 0
        %645 = vmatpush1.bf16.msra.mxu0 0
        %646 = vmatprep.subr.bf16.mxu0 0
        %647 = vmatpush1.bf16.msra.mxu0 0
        %648 = vmatprep.mubr.bf16.mxu0 0
        %649 = vmatmul.mubr.bf16.gmra.mrb[0].mxu0 %v505
        %v650 = vpop.f32.mrb[0].mxu0
        %v651 = vadd.f32 0.0, %v650
        %v652 = vpop.f32.mrb[0].mxu0
        %v653 = vadd.f32 0.0, %v652
        %v654 = vpop.f32.mrb[0].mxu0
        %v655 = vadd.f32 0.0, %v654
        %v656 = vpop.f32.mrb[0].mxu0
        %v657 = vadd.f32 0.0, %v656
        %658 = vdwg.mxu0
        %659 = vmatprep.subr.bf16.mxu0 %v522
        %660 = vmatpush1.bf16.msra.mxu0 %v520
        %661 = vmatprep.subr.bf16.mxu0 0
        %662 = vmatpush1.bf16.msra.mxu0 0
        %663 = vmatprep.subr.bf16.mxu0 0
        %664 = vmatpush1.bf16.msra.mxu0 0
        %665 = vmatprep.subr.bf16.mxu0 0
        %666 = vmatpush1.bf16.msra.mxu0 0
        %667 = vmatprep.subr.bf16.mxu0 0
        %668 = vmatpush1.bf16.msra.mxu0 0
        %669 = vmatprep.subr.bf16.mxu0 0
        %670 = vmatpush1.bf16.msra.mxu0 0
        %671 = vmatprep.subr.bf16.mxu0 0
        %672 = vmatpush1.bf16.msra.mxu0 0
        %673 = vmatprep.subr.bf16.mxu0 0
        %674 = vmatpush1.bf16.msra.mxu0 0
        %675 = vmatprep.subr.bf16.mxu0 0
        %676 = vmatpush1.bf16.msra.mxu0 0
        %677 = vmatprep.subr.bf16.mxu0 0
        %678 = vmatpush1.bf16.msra.mxu0 0
        %679 = vmatprep.subr.bf16.mxu0 0
        %680 = vmatpush1.bf16.msra.mxu0 0
        %681 = vmatprep.subr.bf16.mxu0 0
        %682 = vmatpush1.bf16.msra.mxu0 0
        %683 = vmatprep.subr.bf16.mxu0 0
        %684 = vmatpush1.bf16.msra.mxu0 0
        %685 = vmatprep.subr.bf16.mxu0 0
        %686 = vmatpush1.bf16.msra.mxu0 0
        %687 = vmatprep.subr.bf16.mxu0 0
        %688 = vmatpush1.bf16.msra.mxu0 0
        %689 = vmatprep.subr.bf16.mxu0 0
        %690 = vmatpush1.bf16.msra.mxu0 0
        %691 = vmatprep.mubr.bf16.mxu0 0
        %692 = vmatmul.mubr.bf16.gmra.mrb[0].mxu0 %v505
        %v693 = vpop.f32.mrb[0].mxu0
        %v694 = vadd.f32 0.0, %v693
        %v695 = vpop.f32.mrb[0].mxu0
        %v696 = vadd.f32 0.0, %v695
        %v697 = vpop.f32.mrb[0].mxu0
        %v698 = vadd.f32 0.0, %v697
        %v699 = vpop.f32.mrb[0].mxu0
        %v700 = vadd.f32 0.0, %v699
        %701 = vdwg.mxu0
        %702 = vmatprep.subr.bf16.mxu0 %v526
        %703 = vmatpush1.bf16.msra.mxu0 %v524
        %704 = vmatprep.subr.bf16.mxu0 0
        %705 = vmatpush1.bf16.msra.mxu0 0
        %706 = vmatprep.subr.bf16.mxu0 0
        %707 = vmatpush1.bf16.msra.mxu0 0
        %708 = vmatprep.subr.bf16.mxu0 0
        %709 = vmatpush1.bf16.msra.mxu0 0
        %710 = vmatprep.subr.bf16.mxu0 0
        %711 = vmatpush1.bf16.msra.mxu0 0
        %712 = vmatprep.subr.bf16.mxu0 0
        %713 = vmatpush1.bf16.msra.mxu0 0
        %714 = vmatprep.subr.bf16.mxu0 0
        %715 = vmatpush1.bf16.msra.mxu0 0
        %716 = vmatprep.subr.bf16.mxu0 0
        %717 = vmatpush1.bf16.msra.mxu0 0
        %718 = vmatprep.subr.bf16.mxu0 0
        %719 = vmatpush1.bf16.msra.mxu0 0
        %720 = vmatprep.subr.bf16.mxu0 0
        %721 = vmatpush1.bf16.msra.mxu0 0
        %722 = vmatprep.subr.bf16.mxu0 0
        %723 = vmatpush1.bf16.msra.mxu0 0
        %724 = vmatprep.subr.bf16.mxu0 0
        %725 = vmatpush1.bf16.msra.mxu0 0
        %726 = vmatprep.subr.bf16.mxu0 0
        %727 = vmatpush1.bf16.msra.mxu0 0
        %728 = vmatprep.subr.bf16.mxu0 0
        %729 = vmatpush1.bf16.msra.mxu0 0
        %730 = vmatprep.subr.bf16.mxu0 0
        %731 = vmatpush1.bf16.msra.mxu0 0
        %732 = vmatprep.subr.bf16.mxu0 0
        %733 = vmatpush1.bf16.msra.mxu0 0
        %734 = vmatprep.mubr.bf16.mxu0 0
        %735 = vmatmul.mubr.bf16.gmra.mrb[0].mxu0 %v505
        %v736 = vpop.f32.mrb[0].mxu0
        %v737 = vadd.f32 0.0, %v736
        %v738 = vpop.f32.mrb[0].mxu0
        %v739 = vadd.f32 0.0, %v738
        %v740 = vpop.f32.mrb[0].mxu0
        %v741 = vadd.f32 0.0, %v740
        %v742 = vpop.f32.mrb[0].mxu0
        %v743 = vadd.f32 0.0, %v742
        %744 = vdwg.mxu0
        %745 = vmatprep.subr.bf16.mxu0 0
        %746 = vmatpush1.bf16.msra.mxu0 %v528
        %747 = vmatprep.subr.bf16.mxu0 0
        %748 = vmatpush1.bf16.msra.mxu0 0
        %749 = vmatprep.subr.bf16.mxu0 0
        %750 = vmatpush1.bf16.msra.mxu0 0
        %751 = vmatprep.subr.bf16.mxu0 0
        %752 = vmatpush1.bf16.msra.mxu0 0
        %753 = vmatprep.subr.bf16.mxu0 0
        %754 = vmatpush1.bf16.msra.mxu0 0
        %755 = vmatprep.subr.bf16.mxu0 0
        %756 = vmatpush1.bf16.msra.mxu0 0
        %757 = vmatprep.subr.bf16.mxu0 0
        %758 = vmatpush1.bf16.msra.mxu0 0
        %759 = vmatprep.subr.bf16.mxu0 0
        %760 = vmatpush1.bf16.msra.mxu0 0
        %761 = vmatprep.subr.bf16.mxu0 0
        %762 = vmatpush1.bf16.msra.mxu0 0
        %763 = vmatprep.subr.bf16.mxu0 0
        %764 = vmatpush1.bf16.msra.mxu0 0
        %765 = vmatprep.subr.bf16.mxu0 0
        %766 = vmatpush1.bf16.msra.mxu0 0
        %767 = vmatprep.subr.bf16.mxu0 0
        %768 = vmatpush1.bf16.msra.mxu0 0
        %769 = vmatprep.subr.bf16.mxu0 0
        %770 = vmatpush1.bf16.msra.mxu0 0
        %771 = vmatprep.subr.bf16.mxu0 0
        %772 = vmatpush1.bf16.msra.mxu0 0
        %773 = vmatprep.subr.bf16.mxu0 0
        %774 = vmatpush1.bf16.msra.mxu0 0
        %775 = vmatprep.subr.bf16.mxu0 0
        %776 = vmatpush1.bf16.msra.mxu0 0
        %777 = vmatprep.mubr.bf16.mxu0 0
        %778 = vmatmul.mubr.bf16.gmra.mrb[0].mxu0 %v505
        %v779 = vpop.f32.mrb[0].mxu0
        %v780 = vadd.f32 0.0, %v779
        %v781 = vpop.f32.mrb[0].mxu0
        %v782 = vpop.f32.mrb[0].mxu0
        %v783 = vadd.f32 0.0, %v782
        %v784 = vpop.f32.mrb[0].mxu0
        %785 = vdwg.mxu0
        %v788 = vunpack.c.l.b16 %v479
        %v789 = vunpack.c.l.b16 %v480
        %v790 = vpack.c.b16 %v789, %v788
        %v792 = vsel %vm503, %v790, 0
        %v794 = vsel %vm507, %v458, 0
        %796 = vmatprep.subr.bf16.mxu0 %v508
        %797 = vmatpush1.bf16.msra.mxu0 %v794
        %798 = vmatprep.subr.bf16.mxu0 0
        %799 = vmatpush1.bf16.msra.mxu0 0
        %800 = vmatprep.subr.bf16.mxu0 0
        %801 = vmatpush1.bf16.msra.mxu0 0
        %802 = vmatprep.subr.bf16.mxu0 0
        %803 = vmatpush1.bf16.msra.mxu0 0
        %804 = vmatprep.subr.bf16.mxu0 0
        %805 = vmatpush1.bf16.msra.mxu0 0
        %806 = vmatprep.subr.bf16.mxu0 0
        %807 = vmatpush1.bf16.msra.mxu0 0
        %808 = vmatprep.subr.bf16.mxu0 0
        %809 = vmatpush1.bf16.msra.mxu0 0
        %810 = vmatprep.subr.bf16.mxu0 0
        %811 = vmatpush1.bf16.msra.mxu0 0
        %812 = vmatprep.subr.bf16.mxu0 0
        %813 = vmatpush1.bf16.msra.mxu0 0
        %814 = vmatprep.subr.bf16.mxu0 0
        %815 = vmatpush1.bf16.msra.mxu0 0
        %816 = vmatprep.subr.bf16.mxu0 0
        %817 = vmatpush1.bf16.msra.mxu0 0
        %818 = vmatprep.subr.bf16.mxu0 0
        %819 = vmatpush1.bf16.msra.mxu0 0
        %820 = vmatprep.subr.bf16.mxu0 0
        %821 = vmatpush1.bf16.msra.mxu0 0
        %822 = vmatprep.subr.bf16.mxu0 0
        %823 = vmatpush1.bf16.msra.mxu0 0
        %824 = vmatprep.subr.bf16.mxu0 0
        %825 = vmatpush1.bf16.msra.mxu0 0
        %826 = vmatprep.subr.bf16.mxu0 0
        %827 = vmatpush1.bf16.msra.mxu0 0
        %828 = vmatprep.mubr.bf16.mxu0 0
        %829 = vmatmul.mubr.bf16.gmra.mrb[0].mxu0 %v792
        %v830 = vpop.f32.mrb[0].mxu0
        %v831 = vadd.f32 %v565, %v830
        %v832 = vpop.f32.mrb[0].mxu0
        %v833 = vadd.f32 %v567, %v832
        %v834 = vpop.f32.mrb[0].mxu0
        %v835 = vadd.f32 %v569, %v834
        %v836 = vpop.f32.mrb[0].mxu0
        %v837 = vadd.f32 %v571, %v836
        %838 = vdwg.mxu0
        %839 = vmatprep.subr.bf16.mxu0 %v512
        %840 = vmatpush1.bf16.msra.mxu0 %v510
        %841 = vmatprep.subr.bf16.mxu0 0
        %842 = vmatpush1.bf16.msra.mxu0 0
        %843 = vmatprep.subr.bf16.mxu0 0
        %844 = vmatpush1.bf16.msra.mxu0 0
        %845 = vmatprep.subr.bf16.mxu0 0
        %846 = vmatpush1.bf16.msra.mxu0 0
        %847 = vmatprep.subr.bf16.mxu0 0
        %848 = vmatpush1.bf16.msra.mxu0 0
        %849 = vmatprep.subr.bf16.mxu0 0
        %850 = vmatpush1.bf16.msra.mxu0 0
        %851 = vmatprep.subr.bf16.mxu0 0
        %852 = vmatpush1.bf16.msra.mxu0 0
        %853 = vmatprep.subr.bf16.mxu0 0
        %854 = vmatpush1.bf16.msra.mxu0 0
        %855 = vmatprep.subr.bf16.mxu0 0
        %856 = vmatpush1.bf16.msra.mxu0 0
        %857 = vmatprep.subr.bf16.mxu0 0
        %858 = vmatpush1.bf16.msra.mxu0 0
        %859 = vmatprep.subr.bf16.mxu0 0
        %860 = vmatpush1.bf16.msra.mxu0 0
        %861 = vmatprep.subr.bf16.mxu0 0
        %862 = vmatpush1.bf16.msra.mxu0 0
        %863 = vmatprep.subr.bf16.mxu0 0
        %864 = vmatpush1.bf16.msra.mxu0 0
        %865 = vmatprep.subr.bf16.mxu0 0
        %866 = vmatpush1.bf16.msra.mxu0 0
        %867 = vmatprep.subr.bf16.mxu0 0
        %868 = vmatpush1.bf16.msra.mxu0 0
        %869 = vmatprep.subr.bf16.mxu0 0
        %870 = vmatpush1.bf16.msra.mxu0 0
        %871 = vmatprep.mubr.bf16.mxu0 0
        %872 = vmatmul.mubr.bf16.gmra.mrb[0].mxu0 %v792
        %v873 = vpop.f32.mrb[0].mxu0
        %v874 = vadd.f32 %v608, %v873
        %v875 = vpop.f32.mrb[0].mxu0
        %v876 = vadd.f32 %v610, %v875
        %v877 = vpop.f32.mrb[0].mxu0
        %v878 = vadd.f32 %v612, %v877
        %v879 = vpop.f32.mrb[0].mxu0
        %v880 = vadd.f32 %v614, %v879
        %881 = vdwg.mxu0
        %882 = vmatprep.subr.bf16.mxu0 %v516
        %883 = vmatpush1.bf16.msra.mxu0 %v514
        %884 = vmatprep.subr.bf16.mxu0 0
        %885 = vmatpush1.bf16.msra.mxu0 0
        %886 = vmatprep.subr.bf16.mxu0 0
        %887 = vmatpush1.bf16.msra.mxu0 0
        %888 = vmatprep.subr.bf16.mxu0 0
        %889 = vmatpush1.bf16.msra.mxu0 0
        %890 = vmatprep.subr.bf16.mxu0 0
        %891 = vmatpush1.bf16.msra.mxu0 0
        %892 = vmatprep.subr.bf16.mxu0 0
        %893 = vmatpush1.bf16.msra.mxu0 0
        %894 = vmatprep.subr.bf16.mxu0 0
        %895 = vmatpush1.bf16.msra.mxu0 0
        %896 = vmatprep.subr.bf16.mxu0 0
        %897 = vmatpush1.bf16.msra.mxu0 0
        %898 = vmatprep.subr.bf16.mxu0 0
        %899 = vmatpush1.bf16.msra.mxu0 0
        %900 = vmatprep.subr.bf16.mxu0 0
        %901 = vmatpush1.bf16.msra.mxu0 0
        %902 = vmatprep.subr.bf16.mxu0 0
        %903 = vmatpush1.bf16.msra.mxu0 0
        %904 = vmatprep.subr.bf16.mxu0 0
        %905 = vmatpush1.bf16.msra.mxu0 0
        %906 = vmatprep.subr.bf16.mxu0 0
        %907 = vmatpush1.bf16.msra.mxu0 0
        %908 = vmatprep.subr.bf16.mxu0 0
        %909 = vmatpush1.bf16.msra.mxu0 0
        %910 = vmatprep.subr.bf16.mxu0 0
        %911 = vmatpush1.bf16.msra.mxu0 0
        %912 = vmatprep.subr.bf16.mxu0 0
        %913 = vmatpush1.bf16.msra.mxu0 0
        %914 = vmatprep.mubr.bf16.mxu0 0
        %915 = vmatmul.mubr.bf16.gmra.mrb[0].mxu0 %v792
        %v916 = vpop.f32.mrb[0].mxu0
        %v917 = vadd.f32 %v651, %v916
        %v918 = vpop.f32.mrb[0].mxu0
        %v919 = vadd.f32 %v653, %v918
        %v920 = vpop.f32.mrb[0].mxu0
        %v921 = vadd.f32 %v655, %v920
        %v922 = vpop.f32.mrb[0].mxu0
        %v923 = vadd.f32 %v657, %v922
        %924 = vdwg.mxu0
        %925 = vmatprep.subr.bf16.mxu0 %v520
        %926 = vmatpush1.bf16.msra.mxu0 %v518
        %927 = vmatprep.subr.bf16.mxu0 0
        %928 = vmatpush1.bf16.msra.mxu0 0
        %929 = vmatprep.subr.bf16.mxu0 0
        %930 = vmatpush1.bf16.msra.mxu0 0
        %931 = vmatprep.subr.bf16.mxu0 0
        %932 = vmatpush1.bf16.msra.mxu0 0
        %933 = vmatprep.subr.bf16.mxu0 0
        %934 = vmatpush1.bf16.msra.mxu0 0
        %935 = vmatprep.subr.bf16.mxu0 0
        %936 = vmatpush1.bf16.msra.mxu0 0
        %937 = vmatprep.subr.bf16.mxu0 0
        %938 = vmatpush1.bf16.msra.mxu0 0
        %939 = vmatprep.subr.bf16.mxu0 0
        %940 = vmatpush1.bf16.msra.mxu0 0
        %941 = vmatprep.subr.bf16.mxu0 0
        %942 = vmatpush1.bf16.msra.mxu0 0
        %943 = vmatprep.subr.bf16.mxu0 0
        %944 = vmatpush1.bf16.msra.mxu0 0
        %945 = vmatprep.subr.bf16.mxu0 0
        %946 = vmatpush1.bf16.msra.mxu0 0
        %947 = vmatprep.subr.bf16.mxu0 0
        %948 = vmatpush1.bf16.msra.mxu0 0
        %949 = vmatprep.subr.bf16.mxu0 0
        %950 = vmatpush1.bf16.msra.mxu0 0
        %951 = vmatprep.subr.bf16.mxu0 0
        %952 = vmatpush1.bf16.msra.mxu0 0
        %953 = vmatprep.subr.bf16.mxu0 0
        %954 = vmatpush1.bf16.msra.mxu0 0
        %955 = vmatprep.subr.bf16.mxu0 0
        %956 = vmatpush1.bf16.msra.mxu0 0
        %957 = vmatprep.mubr.bf16.mxu0 0
        %958 = vmatmul.mubr.bf16.gmra.mrb[0].mxu0 %v792
        %v959 = vpop.f32.mrb[0].mxu0
        %v960 = vadd.f32 %v694, %v959
        %v961 = vpop.f32.mrb[0].mxu0
        %v962 = vadd.f32 %v696, %v961
        %v963 = vpop.f32.mrb[0].mxu0
        %v964 = vadd.f32 %v698, %v963
        %v965 = vpop.f32.mrb[0].mxu0
        %v966 = vadd.f32 %v700, %v965
        %967 = vdwg.mxu0
        %968 = vmatprep.subr.bf16.mxu0 %v524
        %969 = vmatpush1.bf16.msra.mxu0 %v522
        %970 = vmatprep.subr.bf16.mxu0 0
        %971 = vmatpush1.bf16.msra.mxu0 0
        %972 = vmatprep.subr.bf16.mxu0 0
        %973 = vmatpush1.bf16.msra.mxu0 0
        %974 = vmatprep.subr.bf16.mxu0 0
        %975 = vmatpush1.bf16.msra.mxu0 0
        %976 = vmatprep.subr.bf16.mxu0 0
        %977 = vmatpush1.bf16.msra.mxu0 0
        %978 = vmatprep.subr.bf16.mxu0 0
        %979 = vmatpush1.bf16.msra.mxu0 0
        %980 = vmatprep.subr.bf16.mxu0 0
        %981 = vmatpush1.bf16.msra.mxu0 0
        %982 = vmatprep.subr.bf16.mxu0 0
        %983 = vmatpush1.bf16.msra.mxu0 0
        %984 = vmatprep.subr.bf16.mxu0 0
        %985 = vmatpush1.bf16.msra.mxu0 0
        %986 = vmatprep.subr.bf16.mxu0 0
        %987 = vmatpush1.bf16.msra.mxu0 0
        %988 = vmatprep.subr.bf16.mxu0 0
        %989 = vmatpush1.bf16.msra.mxu0 0
        %990 = vmatprep.subr.bf16.mxu0 0
        %991 = vmatpush1.bf16.msra.mxu0 0
        %992 = vmatprep.subr.bf16.mxu0 0
        %993 = vmatpush1.bf16.msra.mxu0 0
        %994 = vmatprep.subr.bf16.mxu0 0
        %995 = vmatpush1.bf16.msra.mxu0 0
        %996 = vmatprep.subr.bf16.mxu0 0
        %997 = vmatpush1.bf16.msra.mxu0 0
        %998 = vmatprep.subr.bf16.mxu0 0
        %999 = vmatpush1.bf16.msra.mxu0 0
        %1000 = vmatprep.mubr.bf16.mxu0 0
        %1001 = vmatmul.mubr.bf16.gmra.mrb[0].mxu0 %v792
        %v1002 = vpop.f32.mrb[0].mxu0
        %v1003 = vadd.f32 %v737, %v1002
        %v1004 = vpop.f32.mrb[0].mxu0
        %v1005 = vadd.f32 %v739, %v1004
        %v1006 = vpop.f32.mrb[0].mxu0
        %v1007 = vadd.f32 %v741, %v1006
        %v1008 = vpop.f32.mrb[0].mxu0
        %v1009 = vadd.f32 %v743, %v1008
        %1010 = vdwg.mxu0
        %1011 = vmatprep.subr.bf16.mxu0 0
        %1012 = vmatpush1.bf16.msra.mxu0 %v526
        %1013 = vmatprep.subr.bf16.mxu0 0
        %1014 = vmatpush1.bf16.msra.mxu0 0
        %1015 = vmatprep.subr.bf16.mxu0 0
        %1016 = vmatpush1.bf16.msra.mxu0 0
        %1017 = vmatprep.subr.bf16.mxu0 0
        %1018 = vmatpush1.bf16.msra.mxu0 0
        %1019 = vmatprep.subr.bf16.mxu0 0
        %1020 = vmatpush1.bf16.msra.mxu0 0
        %1021 = vmatprep.subr.bf16.mxu0 0
        %1022 = vmatpush1.bf16.msra.mxu0 0
        %1023 = vmatprep.subr.bf16.mxu0 0
        %1024 = vmatpush1.bf16.msra.mxu0 0
        %1025 = vmatprep.subr.bf16.mxu0 0
        %1026 = vmatpush1.bf16.msra.mxu0 0
        %1027 = vmatprep.subr.bf16.mxu0 0
        %1028 = vmatpush1.bf16.msra.mxu0 0
        %1029 = vmatprep.subr.bf16.mxu0 0
        %1030 = vmatpush1.bf16.msra.mxu0 0
        %1031 = vmatprep.subr.bf16.mxu0 0
        %1032 = vmatpush1.bf16.msra.mxu0 0
        %1033 = vmatprep.subr.bf16.mxu0 0
        %1034 = vmatpush1.bf16.msra.mxu0 0
        %1035 = vmatprep.subr.bf16.mxu0 0
        %1036 = vmatpush1.bf16.msra.mxu0 0
        %1037 = vmatprep.subr.bf16.mxu0 0
        %1038 = vmatpush1.bf16.msra.mxu0 0
        %1039 = vmatprep.subr.bf16.mxu0 0
        %1040 = vmatpush1.bf16.msra.mxu0 0
        %1041 = vmatprep.subr.bf16.mxu0 0
        %1042 = vmatpush1.bf16.msra.mxu0 0
        %1043 = vmatprep.mubr.bf16.mxu0 0
        %1044 = vmatmul.mubr.bf16.gmra.mrb[0].mxu0 %v792
        %v1045 = vpop.f32.mrb[0].mxu0
        %v1046 = vadd.f32 %v780, %v1045
        %v1047 = vpop.f32.mrb[0].mxu0
        %v1048 = vpop.f32.mrb[0].mxu0
        %v1049 = vadd.f32 %v783, %v1048
        %v1050 = vpop.f32.mrb[0].mxu0
        %1051 = vdwg.mxu0
        %v1053 = vrot.slane %v313, 6
        %1054 = vrot.lane.b32.xlu0 %v1053, 127
        %v1055 = vpop.permute.xlu0 %1054
        %v1056 = vsel %vm362, %v484, %v1055
        %v1057 = vrot.slane %v313, 4
        %1058 = vrot.lane.b32.xlu0 %v1057, 126
        %v1059 = vpop.permute.xlu0 %1058
        %v1060 = vsel %vm410, %v488, %v1059
        %v1063 = vsel %vm422, %v312, %v1056
        %v1065 = vsel %vm456, %v1063, %v1060
        %s1066 = scalar_lea.vmem [#allocation4], 16
        %v1067 = vld [vmem:[%s1066] sm:$0xf]
        %v1068 = vld [vmem:[%s1066 + $0x4] sm:$0xf]
        %v1071 = vunpack.c.l.b16 %v1067
        %v1072 = vunpack.c.l.b16 %v1068
        %v1073 = vpack.c.b16 %v1072, %v1071
        %v1075 = vsel %vm503, %v1073, 0
        %v1077 = vsel %vm507, %v1065, 0
        %1079 = vmatprep.subr.bf16.mxu0 %v512
        %1080 = vmatpush1.bf16.msra.mxu0 %v510
        %1081 = vmatprep.subr.bf16.mxu0 0
        %1082 = vmatpush1.bf16.msra.mxu0 0
        %1083 = vmatprep.subr.bf16.mxu0 0
        %1084 = vmatpush1.bf16.msra.mxu0 0
        %1085 = vmatprep.subr.bf16.mxu0 0
        %1086 = vmatpush1.bf16.msra.mxu0 0
        %1087 = vmatprep.subr.bf16.mxu0 0
        %1088 = vmatpush1.bf16.msra.mxu0 0
        %1089 = vmatprep.subr.bf16.mxu0 0
        %1090 = vmatpush1.bf16.msra.mxu0 0
        %1091 = vmatprep.subr.bf16.mxu0 0
        %1092 = vmatpush1.bf16.msra.mxu0 0
        %1093 = vmatprep.subr.bf16.mxu0 0
        %1094 = vmatpush1.bf16.msra.mxu0 0
        %1095 = vmatprep.subr.bf16.mxu0 0
        %1096 = vmatpush1.bf16.msra.mxu0 0
        %1097 = vmatprep.subr.bf16.mxu0 0
        %1098 = vmatpush1.bf16.msra.mxu0 0
        %1099 = vmatprep.subr.bf16.mxu0 0
        %1100 = vmatpush1.bf16.msra.mxu0 0
        %1101 = vmatprep.subr.bf16.mxu0 0
        %1102 = vmatpush1.bf16.msra.mxu0 0
        %1103 = vmatprep.subr.bf16.mxu0 0
        %1104 = vmatpush1.bf16.msra.mxu0 0
        %1105 = vmatprep.subr.bf16.mxu0 0
        %1106 = vmatpush1.bf16.msra.mxu0 0
        %1107 = vmatprep.subr.bf16.mxu0 0
        %1108 = vmatpush1.bf16.msra.mxu0 0
        %1109 = vmatprep.subr.bf16.mxu0 0
        %1110 = vmatpush1.bf16.msra.mxu0 0
        %1111 = vmatprep.mubr.bf16.mxu0 0
        %1112 = vmatmul.mubr.bf16.gmra.mrb[0].mxu0 %v1075
        %v1113 = vpop.f32.mrb[0].mxu0
        %v1114 = vadd.f32 0.0, %v1113
        %v1115 = vpop.f32.mrb[0].mxu0
        %v1116 = vadd.f32 0.0, %v1115
        %v1117 = vpop.f32.mrb[0].mxu0
        %v1118 = vadd.f32 0.0, %v1117
        %v1119 = vpop.f32.mrb[0].mxu0
        %v1120 = vadd.f32 0.0, %v1119
        %1121 = vdwg.mxu0
        %1122 = vmatprep.subr.bf16.mxu0 %v516
        %1123 = vmatpush1.bf16.msra.mxu0 %v514
        %1124 = vmatprep.subr.bf16.mxu0 0
        %1125 = vmatpush1.bf16.msra.mxu0 0
        %1126 = vmatprep.subr.bf16.mxu0 0
        %1127 = vmatpush1.bf16.msra.mxu0 0
        %1128 = vmatprep.subr.bf16.mxu0 0
        %1129 = vmatpush1.bf16.msra.mxu0 0
        %1130 = vmatprep.subr.bf16.mxu0 0
        %1131 = vmatpush1.bf16.msra.mxu0 0
        %1132 = vmatprep.subr.bf16.mxu0 0
        %1133 = vmatpush1.bf16.msra.mxu0 0
        %1134 = vmatprep.subr.bf16.mxu0 0
        %1135 = vmatpush1.bf16.msra.mxu0 0
        %1136 = vmatprep.subr.bf16.mxu0 0
        %1137 = vmatpush1.bf16.msra.mxu0 0
        %1138 = vmatprep.subr.bf16.mxu0 0
        %1139 = vmatpush1.bf16.msra.mxu0 0
        %1140 = vmatprep.subr.bf16.mxu0 0
        %1141 = vmatpush1.bf16.msra.mxu0 0
        %1142 = vmatprep.subr.bf16.mxu0 0
        %1143 = vmatpush1.bf16.msra.mxu0 0
        %1144 = vmatprep.subr.bf16.mxu0 0
        %1145 = vmatpush1.bf16.msra.mxu0 0
        %1146 = vmatprep.subr.bf16.mxu0 0
        %1147 = vmatpush1.bf16.msra.mxu0 0
        %1148 = vmatprep.subr.bf16.mxu0 0
        %1149 = vmatpush1.bf16.msra.mxu0 0
        %1150 = vmatprep.subr.bf16.mxu0 0
        %1151 = vmatpush1.bf16.msra.mxu0 0
        %1152 = vmatprep.subr.bf16.mxu0 0
        %1153 = vmatpush1.bf16.msra.mxu0 0
        %1154 = vmatprep.mubr.bf16.mxu0 0
        %1155 = vmatmul.mubr.bf16.gmra.mrb[0].mxu0 %v1075
        %v1156 = vpop.f32.mrb[0].mxu0
        %v1157 = vadd.f32 0.0, %v1156
        %v1158 = vpop.f32.mrb[0].mxu0
        %v1159 = vadd.f32 0.0, %v1158
        %v1160 = vpop.f32.mrb[0].mxu0
        %v1161 = vadd.f32 0.0, %v1160
        %v1162 = vpop.f32.mrb[0].mxu0
        %v1163 = vadd.f32 0.0, %v1162
        %1164 = vdwg.mxu0
        %1165 = vmatprep.subr.bf16.mxu0 %v520
        %1166 = vmatpush1.bf16.msra.mxu0 %v518
        %1167 = vmatprep.subr.bf16.mxu0 0
        %1168 = vmatpush1.bf16.msra.mxu0 0
        %1169 = vmatprep.subr.bf16.mxu0 0
        %1170 = vmatpush1.bf16.msra.mxu0 0
        %1171 = vmatprep.subr.bf16.mxu0 0
        %1172 = vmatpush1.bf16.msra.mxu0 0
        %1173 = vmatprep.subr.bf16.mxu0 0
        %1174 = vmatpush1.bf16.msra.mxu0 0
        %1175 = vmatprep.subr.bf16.mxu0 0
        %1176 = vmatpush1.bf16.msra.mxu0 0
        %1177 = vmatprep.subr.bf16.mxu0 0
        %1178 = vmatpush1.bf16.msra.mxu0 0
        %1179 = vmatprep.subr.bf16.mxu0 0
        %1180 = vmatpush1.bf16.msra.mxu0 0
        %1181 = vmatprep.subr.bf16.mxu0 0
        %1182 = vmatpush1.bf16.msra.mxu0 0
        %1183 = vmatprep.subr.bf16.mxu0 0
        %1184 = vmatpush1.bf16.msra.mxu0 0
        %1185 = vmatprep.subr.bf16.mxu0 0
        %1186 = vmatpush1.bf16.msra.mxu0 0
        %1187 = vmatprep.subr.bf16.mxu0 0
        %1188 = vmatpush1.bf16.msra.mxu0 0
        %1189 = vmatprep.subr.bf16.mxu0 0
        %1190 = vmatpush1.bf16.msra.mxu0 0
        %1191 = vmatprep.subr.bf16.mxu0 0
        %1192 = vmatpush1.bf16.msra.mxu0 0
        %1193 = vmatprep.subr.bf16.mxu0 0
        %1194 = vmatpush1.bf16.msra.mxu0 0
        %1195 = vmatprep.subr.bf16.mxu0 0
        %1196 = vmatpush1.bf16.msra.mxu0 0
        %1197 = vmatprep.mubr.bf16.mxu0 0
        %1198 = vmatmul.mubr.bf16.gmra.mrb[0].mxu0 %v1075
        %v1199 = vpop.f32.mrb[0].mxu0
        %v1200 = vadd.f32 0.0, %v1199
        %v1201 = vpop.f32.mrb[0].mxu0
        %v1202 = vadd.f32 0.0, %v1201
        %v1203 = vpop.f32.mrb[0].mxu0
        %v1204 = vadd.f32 0.0, %v1203
        %v1205 = vpop.f32.mrb[0].mxu0
        %v1206 = vadd.f32 0.0, %v1205
        %1207 = vdwg.mxu0
        %1208 = vmatprep.subr.bf16.mxu0 %v524
        %1209 = vmatpush1.bf16.msra.mxu0 %v522
        %1210 = vmatprep.subr.bf16.mxu0 0
        %1211 = vmatpush1.bf16.msra.mxu0 0
        %1212 = vmatprep.subr.bf16.mxu0 0
        %1213 = vmatpush1.bf16.msra.mxu0 0
        %1214 = vmatprep.subr.bf16.mxu0 0
        %1215 = vmatpush1.bf16.msra.mxu0 0
        %1216 = vmatprep.subr.bf16.mxu0 0
        %1217 = vmatpush1.bf16.msra.mxu0 0
        %1218 = vmatprep.subr.bf16.mxu0 0
        %1219 = vmatpush1.bf16.msra.mxu0 0
        %1220 = vmatprep.subr.bf16.mxu0 0
        %1221 = vmatpush1.bf16.msra.mxu0 0
        %1222 = vmatprep.subr.bf16.mxu0 0
        %1223 = vmatpush1.bf16.msra.mxu0 0
        %1224 = vmatprep.subr.bf16.mxu0 0
        %1225 = vmatpush1.bf16.msra.mxu0 0
        %1226 = vmatprep.subr.bf16.mxu0 0
        %1227 = vmatpush1.bf16.msra.mxu0 0
        %1228 = vmatprep.subr.bf16.mxu0 0
        %1229 = vmatpush1.bf16.msra.mxu0 0
        %1230 = vmatprep.subr.bf16.mxu0 0
        %1231 = vmatpush1.bf16.msra.mxu0 0
        %1232 = vmatprep.subr.bf16.mxu0 0
        %1233 = vmatpush1.bf16.msra.mxu0 0
        %1234 = vmatprep.subr.bf16.mxu0 0
        %1235 = vmatpush1.bf16.msra.mxu0 0
        %1236 = vmatprep.subr.bf16.mxu0 0
        %1237 = vmatpush1.bf16.msra.mxu0 0
        %1238 = vmatprep.subr.bf16.mxu0 0
        %1239 = vmatpush1.bf16.msra.mxu0 0
        %1240 = vmatprep.mubr.bf16.mxu0 0
        %1241 = vmatmul.mubr.bf16.gmra.mrb[0].mxu0 %v1075
        %v1242 = vpop.f32.mrb[0].mxu0
        %v1243 = vadd.f32 0.0, %v1242
        %v1244 = vpop.f32.mrb[0].mxu0
        %v1245 = vadd.f32 0.0, %v1244
        %v1246 = vpop.f32.mrb[0].mxu0
        %v1247 = vadd.f32 0.0, %v1246
        %v1248 = vpop.f32.mrb[0].mxu0
        %v1249 = vadd.f32 0.0, %v1248
        %1250 = vdwg.mxu0
        %1251 = vmatprep.subr.bf16.mxu0 %v528
        %1252 = vmatpush1.bf16.msra.mxu0 %v526
        %1253 = vmatprep.subr.bf16.mxu0 0
        %1254 = vmatpush1.bf16.msra.mxu0 0
        %1255 = vmatprep.subr.bf16.mxu0 0
        %1256 = vmatpush1.bf16.msra.mxu0 0
        %1257 = vmatprep.subr.bf16.mxu0 0
        %1258 = vmatpush1.bf16.msra.mxu0 0
        %1259 = vmatprep.subr.bf16.mxu0 0
        %1260 = vmatpush1.bf16.msra.mxu0 0
        %1261 = vmatprep.subr.bf16.mxu0 0
        %1262 = vmatpush1.bf16.msra.mxu0 0
        %1263 = vmatprep.subr.bf16.mxu0 0
        %1264 = vmatpush1.bf16.msra.mxu0 0
        %1265 = vmatprep.subr.bf16.mxu0 0
        %1266 = vmatpush1.bf16.msra.mxu0 0
        %1267 = vmatprep.subr.bf16.mxu0 0
        %1268 = vmatpush1.bf16.msra.mxu0 0
        %1269 = vmatprep.subr.bf16.mxu0 0
        %1270 = vmatpush1.bf16.msra.mxu0 0
        %1271 = vmatprep.subr.bf16.mxu0 0
        %1272 = vmatpush1.bf16.msra.mxu0 0
        %1273 = vmatprep.subr.bf16.mxu0 0
        %1274 = vmatpush1.bf16.msra.mxu0 0
        %1275 = vmatprep.subr.bf16.mxu0 0
        %1276 = vmatpush1.bf16.msra.mxu0 0
        %1277 = vmatprep.subr.bf16.mxu0 0
        %1278 = vmatpush1.bf16.msra.mxu0 0
        %1279 = vmatprep.subr.bf16.mxu0 0
        %1280 = vmatpush1.bf16.msra.mxu0 0
        %1281 = vmatprep.subr.bf16.mxu0 0
        %1282 = vmatpush1.bf16.msra.mxu0 0
        %1283 = vmatprep.mubr.bf16.mxu0 0
        %1284 = vmatmul.mubr.bf16.gmra.mrb[0].mxu0 %v1075
        %v1285 = vpop.f32.mrb[0].mxu0
        %v1286 = vadd.f32 0.0, %v1285
        %v1287 = vpop.f32.mrb[0].mxu0
        %v1288 = vadd.f32 0.0, %v1287
        %v1289 = vpop.f32.mrb[0].mxu0
        %v1290 = vadd.f32 0.0, %v1289
        %v1291 = vpop.f32.mrb[0].mxu0
        %v1292 = vadd.f32 0.0, %v1291
        %1293 = vdwg.mxu0
        %1294 = vmatprep.subr.bf16.mxu0 0
        %1295 = vmatpush1.bf16.msra.mxu0 %v1077
        %1296 = vmatprep.subr.bf16.mxu0 0
        %1297 = vmatpush1.bf16.msra.mxu0 0
        %1298 = vmatprep.subr.bf16.mxu0 0
        %1299 = vmatpush1.bf16.msra.mxu0 0
        %1300 = vmatprep.subr.bf16.mxu0 0
        %1301 = vmatpush1.bf16.msra.mxu0 0
        %1302 = vmatprep.subr.bf16.mxu0 0
        %1303 = vmatpush1.bf16.msra.mxu0 0
        %1304 = vmatprep.subr.bf16.mxu0 0
        %1305 = vmatpush1.bf16.msra.mxu0 0
        %1306 = vmatprep.subr.bf16.mxu0 0
        %1307 = vmatpush1.bf16.msra.mxu0 0
        %1308 = vmatprep.subr.bf16.mxu0 0
        %1309 = vmatpush1.bf16.msra.mxu0 0
        %1310 = vmatprep.subr.bf16.mxu0 0
        %1311 = vmatpush1.bf16.msra.mxu0 0
        %1312 = vmatprep.subr.bf16.mxu0 0
        %1313 = vmatpush1.bf16.msra.mxu0 0
        %1314 = vmatprep.subr.bf16.mxu0 0
        %1315 = vmatpush1.bf16.msra.mxu0 0
        %1316 = vmatprep.subr.bf16.mxu0 0
        %1317 = vmatpush1.bf16.msra.mxu0 0
        %1318 = vmatprep.subr.bf16.mxu0 0
        %1319 = vmatpush1.bf16.msra.mxu0 0
        %1320 = vmatprep.subr.bf16.mxu0 0
        %1321 = vmatpush1.bf16.msra.mxu0 0
        %1322 = vmatprep.subr.bf16.mxu0 0
        %1323 = vmatpush1.bf16.msra.mxu0 0
        %1324 = vmatprep.subr.bf16.mxu0 0
        %1325 = vmatpush1.bf16.msra.mxu0 0
        %1326 = vmatprep.mubr.bf16.mxu0 0
        %1327 = vmatmul.mubr.bf16.gmra.mrb[0].mxu0 %v1075
        %v1328 = vpop.f32.mrb[0].mxu0
        %v1329 = vadd.f32 0.0, %v1328
        %v1330 = vpop.f32.mrb[0].mxu0
        %v1331 = vpop.f32.mrb[0].mxu0
        %v1332 = vadd.f32 0.0, %v1331
        %v1333 = vpop.f32.mrb[0].mxu0
        %1334 = vdwg.mxu0
        %v1335 = vadd.f32 %v831, %v1114
        %v1336 = vadd.f32 %v833, %v1116
        %v1337 = vadd.f32 %v874, %v1157
        %v1338 = vadd.f32 %v876, %v1159
        %v1339 = vadd.f32 %v917, %v1200
        %v1340 = vadd.f32 %v919, %v1202
        %v1341 = vadd.f32 %v960, %v1243
        %v1342 = vadd.f32 %v962, %v1245
        %v1343 = vadd.f32 %v1003, %v1286
        %v1344 = vadd.f32 %v1005, %v1288
        %v1345 = vadd.f32 %v1046, %v1329
        %v1346 = vadd.f32 %v835, %v1118
        %v1347 = vadd.f32 %v837, %v1120
        %v1348 = vadd.f32 %v878, %v1161
        %v1349 = vadd.f32 %v880, %v1163
        %v1350 = vadd.f32 %v921, %v1204
        %v1351 = vadd.f32 %v923, %v1206
        %v1352 = vadd.f32 %v964, %v1247
        %v1353 = vadd.f32 %v966, %v1249
        %v1354 = vadd.f32 %v1007, %v1290
        %v1355 = vadd.f32 %v1009, %v1292
        %v1356 = vadd.f32 %v1049, %v1332
        %v1357 = vld [vmem:[#allocation7] sm:$0xff]
        %v1358 = vld [vmem:[#allocation7 + $0x8] sm:$0xff]
        %1360 = vset.pattern.permute.xlu0 0
        %1361 = vperm.xlu0 %1360, %v1357
        %v1362 = vpop.permute.xlu0 %1361
        %1365 = vset.pattern.permute.xlu0 0
        %1366 = vperm.xlu0 %1365, %v1358
        %v1367 = vpop.permute.xlu0 %1366
        %v1369 = vadd.f32 %v1335, %v1362
        %v1370 = vadd.f32 %v1336, %v1362
        %v1371 = vadd.f32 %v1337, %v1362
        %v1372 = vadd.f32 %v1338, %v1362
        %v1373 = vadd.f32 %v1339, %v1362
        %v1374 = vadd.f32 %v1340, %v1362
        %v1375 = vadd.f32 %v1341, %v1362
        %v1376 = vadd.f32 %v1342, %v1362
        %v1377 = vadd.f32 %v1343, %v1362
        %v1378 = vadd.f32 %v1344, %v1362
        %v1379 = vadd.f32 %v1345, %v1362
        %v1380 = vadd.f32 %v1346, %v1367
        %v1381 = vadd.f32 %v1347, %v1367
        %v1382 = vadd.f32 %v1348, %v1367
        %v1383 = vadd.f32 %v1349, %v1367
        %v1384 = vadd.f32 %v1350, %v1367
        %v1385 = vadd.f32 %v1351, %v1367
        %v1386 = vadd.f32 %v1352, %v1367
        %v1387 = vadd.f32 %v1353, %v1367
        %v1388 = vadd.f32 %v1354, %v1367
        %v1389 = vadd.f32 %v1355, %v1367
        %v1390 = vadd.f32 %v1356, %v1367
        %v1391 = vmax.f32 %v1369, 0.0
        %v1392 = vmax.f32 %v1370, 0.0
        %v1393 = vmax.f32 %v1371, 0.0
        %v1394 = vmax.f32 %v1372, 0.0
        %v1395 = vmax.f32 %v1373, 0.0
        %v1396 = vmax.f32 %v1374, 0.0
        %v1397 = vmax.f32 %v1375, 0.0
        %v1398 = vmax.f32 %v1376, 0.0
        %v1399 = vmax.f32 %v1377, 0.0
        %v1400 = vmax.f32 %v1378, 0.0
        %v1401 = vmax.f32 %v1379, 0.0
        %v1402 = vmax.f32 %v1380, 0.0
        %v1403 = vmax.f32 %v1381, 0.0
        %v1404 = vmax.f32 %v1382, 0.0
        %v1405 = vmax.f32 %v1383, 0.0
        %v1406 = vmax.f32 %v1384, 0.0
        %v1407 = vmax.f32 %v1385, 0.0
        %v1408 = vmax.f32 %v1386, 0.0
        %v1409 = vmax.f32 %v1387, 0.0
        %v1410 = vmax.f32 %v1388, 0.0
        %v1411 = vmax.f32 %v1389, 0.0
        %v1412 = vmax.f32 %v1390, 0.0
        %v1413 = vlaneseq
        %v1414 = vand.u32 %v1413, 127
        %v1415 = vadd.s32 %v1414, 128
        %v1416 = vadd.s32 %v1414, 256
        %v1417 = vadd.s32 %v1414, 384
        %v1418 = vadd.s32 %v1414, 512
        %v1419 = vadd.s32 %v1414, 640
        %v1420 = vadd.s32 %v1414, 768
        %v1421 = vadd.s32 %v1414, 896
        %v1422 = vadd.s32 %v1414, 1024
        %v1423 = vadd.s32 %v1414, 1152
        %v1424 = vadd.s32 %v1414, 1280
        %v1425 = vand.u32 %v1414, 127
        %v1426 = vand.u32 %v1415, 127
        %v1427 = vand.u32 %v1416, 127
        %v1428 = vand.u32 %v1417, 127
        %v1429 = vand.u32 %v1418, 127
        %v1430 = vand.u32 %v1419, 127
        %v1431 = vand.u32 %v1420, 127
        %v1432 = vand.u32 %v1421, 127
        %v1433 = vand.u32 %v1422, 127
        %v1434 = vand.u32 %v1423, 127
        %v1435 = vand.u32 %v1424, 127
        %s1436 = smul.u32 %s27, 8
        %s1437 = ssub.s32 1, %s1436
        %p1438 = scmp.gt.s32.totalorder %s1437, 0
        %s1439 = scalar_select %p1438, %s1437, 0
        %s1440 = smul.u32 %s1439, 128
        %s1441 = ssub.s32 17, %s1436
        %s1442 = smul.u32 %s1441, 128
        %vm1443 = vcmp.ge.s32.totalorder %v1425, 1
        %vm1444 = vcmp.ge.s32.totalorder %v1426, 1
        %vm1445 = vcmp.ge.s32.totalorder %v1427, 1
        %vm1446 = vcmp.ge.s32.totalorder %v1428, 1
        %vm1447 = vcmp.ge.s32.totalorder %v1429, 1
        %vm1448 = vcmp.ge.s32.totalorder %v1430, 1
        %vm1449 = vcmp.ge.s32.totalorder %v1431, 1
        %vm1450 = vcmp.ge.s32.totalorder %v1432, 1
        %vm1451 = vcmp.ge.s32.totalorder %v1433, 1
        %vm1452 = vcmp.ge.s32.totalorder %v1434, 1
        %vm1453 = vcmp.ge.s32.totalorder %v1435, 1
        %vm1454 = vcmp.lt.s32.totalorder %v1425, 17
        %vm1455 = vcmp.lt.s32.totalorder %v1426, 17
        %vm1456 = vcmp.lt.s32.totalorder %v1427, 17
        %vm1457 = vcmp.lt.s32.totalorder %v1428, 17
        %vm1458 = vcmp.lt.s32.totalorder %v1429, 17
        %vm1459 = vcmp.lt.s32.totalorder %v1430, 17
        %vm1460 = vcmp.lt.s32.totalorder %v1431, 17
        %vm1461 = vcmp.lt.s32.totalorder %v1432, 17
        %vm1462 = vcmp.lt.s32.totalorder %v1433, 17
        %vm1463 = vcmp.lt.s32.totalorder %v1434, 17
        %vm1464 = vcmp.lt.s32.totalorder %v1435, 17
        %vm1465 = vmand %vm1443, %vm1454
        %vm1466 = vmand %vm1444, %vm1455
        %vm1467 = vmand %vm1445, %vm1456
        %vm1468 = vmand %vm1446, %vm1457
        %vm1469 = vmand %vm1447, %vm1458
        %vm1470 = vmand %vm1448, %vm1459
        %vm1471 = vmand %vm1449, %vm1460
        %vm1472 = vmand %vm1450, %vm1461
        %vm1473 = vmand %vm1451, %vm1462
        %vm1474 = vmand %vm1452, %vm1463
        %vm1475 = vmand %vm1453, %vm1464
        %v1476 = vstv %s1440
        %vm1477 = vcmp.ge.s32.totalorder %v1414, %v1476
        %vm1478 = vcmp.ge.s32.totalorder %v1415, %v1476
        %vm1479 = vcmp.ge.s32.totalorder %v1416, %v1476
        %vm1480 = vcmp.ge.s32.totalorder %v1417, %v1476
        %vm1481 = vcmp.ge.s32.totalorder %v1418, %v1476
        %vm1482 = vcmp.ge.s32.totalorder %v1419, %v1476
        %vm1483 = vcmp.ge.s32.totalorder %v1420, %v1476
        %vm1484 = vcmp.ge.s32.totalorder %v1421, %v1476
        %vm1485 = vcmp.ge.s32.totalorder %v1422, %v1476
        %vm1486 = vcmp.ge.s32.totalorder %v1423, %v1476
        %vm1487 = vcmp.ge.s32.totalorder %v1424, %v1476
        %vm1488 = vmand %vm1465, %vm1477
        %vm1489 = vmand %vm1466, %vm1478
        %vm1490 = vmand %vm1467, %vm1479
        %vm1491 = vmand %vm1468, %vm1480
        %vm1492 = vmand %vm1469, %vm1481
        %vm1493 = vmand %vm1470, %vm1482
        %vm1494 = vmand %vm1471, %vm1483
        %vm1495 = vmand %vm1472, %vm1484
        %vm1496 = vmand %vm1473, %vm1485
        %vm1497 = vmand %vm1474, %vm1486
        %vm1498 = vmand %vm1475, %vm1487
        %v1499 = vstv %s1442
        %vm1500 = vcmp.lt.s32.totalorder %v1414, %v1499
        %vm1501 = vcmp.lt.s32.totalorder %v1415, %v1499
        %vm1502 = vcmp.lt.s32.totalorder %v1416, %v1499
        %vm1503 = vcmp.lt.s32.totalorder %v1417, %v1499
        %vm1504 = vcmp.lt.s32.totalorder %v1418, %v1499
        %vm1505 = vcmp.lt.s32.totalorder %v1419, %v1499
        %vm1506 = vcmp.lt.s32.totalorder %v1420, %v1499
        %vm1507 = vcmp.lt.s32.totalorder %v1421, %v1499
        %vm1508 = vcmp.lt.s32.totalorder %v1422, %v1499
        %vm1509 = vcmp.lt.s32.totalorder %v1423, %v1499
        %vm1510 = vcmp.lt.s32.totalorder %v1424, %v1499
        %vm1511 = vmand %vm1488, %vm1500
        %vm1512 = vmand %vm1489, %vm1501
        %vm1513 = vmand %vm1490, %vm1502
        %vm1514 = vmand %vm1491, %vm1503
        %vm1515 = vmand %vm1492, %vm1504
        %vm1516 = vmand %vm1493, %vm1505
        %vm1517 = vmand %vm1494, %vm1506
        %vm1518 = vmand %vm1495, %vm1507
        %vm1519 = vmand %vm1496, %vm1508
        %vm1520 = vmand %vm1497, %vm1509
        %vm1521 = vmand %vm1498, %vm1510
        %v1522 = vsel %vm1511, 1, 0
        %v1523 = vsel %vm1512, 1, 0
        %v1524 = vsel %vm1513, 1, 0
        %v1525 = vsel %vm1514, 1, 0
        %v1526 = vsel %vm1515, 1, 0
        %v1527 = vsel %vm1516, 1, 0
        %v1528 = vsel %vm1517, 1, 0
        %v1529 = vsel %vm1518, 1, 0
        %v1530 = vsel %vm1519, 1, 0
        %v1531 = vsel %vm1520, 1, 0
        %v1532 = vsel %vm1521, 1, 0
        %v1533 = vcvt.s32.f32 %v1522
        %v1534 = vcvt.s32.f32 %v1523
        %v1535 = vcvt.s32.f32 %v1524
        %v1536 = vcvt.s32.f32 %v1525
        %v1537 = vcvt.s32.f32 %v1526
        %v1538 = vcvt.s32.f32 %v1527
        %v1539 = vcvt.s32.f32 %v1528
        %v1540 = vcvt.s32.f32 %v1529
        %v1541 = vcvt.s32.f32 %v1530
        %v1542 = vcvt.s32.f32 %v1531
        %v1543 = vcvt.s32.f32 %v1532
        %v1544 = vmul.f32 %v1391, %v1533
        %v1545 = vmul.f32 %v1392, %v1534
        %v1546 = vmul.f32 %v1393, %v1535
        %v1547 = vmul.f32 %v1394, %v1536
        %v1548 = vmul.f32 %v1395, %v1537
        %v1549 = vmul.f32 %v1396, %v1538
        %v1550 = vmul.f32 %v1397, %v1539
        %v1551 = vmul.f32 %v1398, %v1540
        %v1552 = vmul.f32 %v1399, %v1541
        %v1553 = vmul.f32 %v1400, %v1542
        %v1554 = vmul.f32 %v1401, %v1543
        %v1555 = vmul.f32 %v1402, %v1533
        %v1556 = vmul.f32 %v1403, %v1534
        %v1557 = vmul.f32 %v1404, %v1535
        %v1558 = vmul.f32 %v1405, %v1536
        %v1559 = vmul.f32 %v1406, %v1537
        %v1560 = vmul.f32 %v1407, %v1538
        %v1561 = vmul.f32 %v1408, %v1539
        %v1562 = vmul.f32 %v1409, %v1540
        %v1563 = vmul.f32 %v1410, %v1541
        %v1564 = vmul.f32 %v1411, %v1542
        %v1565 = vmul.f32 %v1412, %v1543
        %v1566 = vpack.c.bf16 %v1555, %v1544
        %v1567 = vpack.c.bf16 %v1556, %v1545
        %v1568 = vpack.c.bf16 %v1557, %v1546
        %v1569 = vpack.c.bf16 %v1558, %v1547
        %v1570 = vpack.c.bf16 %v1559, %v1548
        %v1571 = vpack.c.bf16 %v1560, %v1549
        %v1572 = vpack.c.bf16 %v1561, %v1550
        %v1573 = vpack.c.bf16 %v1562, %v1551
        %v1574 = vpack.c.bf16 %v1563, %v1552
        %v1575 = vpack.c.bf16 %v1564, %v1553
        %v1576 = vpack.c.bf16 %v1565, %v1554
        %1586 = vrot.lane.b32.xlu0 %v1566, 127
        %v1587 = vpop.permute.xlu0 %1586
        %1588 = vrot.lane.b32.xlu0 %v1567, 127
        %v1589 = vpop.permute.xlu0 %1588
        %1590 = vrot.lane.b32.xlu0 %v1568, 127
        %v1591 = vpop.permute.xlu0 %1590
        %1592 = vrot.lane.b32.xlu0 %v1569, 127
        %v1593 = vpop.permute.xlu0 %1592
        %1594 = vrot.lane.b32.xlu0 %v1570, 127
        %v1595 = vpop.permute.xlu0 %1594
        %1596 = vrot.lane.b32.xlu0 %v1571, 127
        %v1597 = vpop.permute.xlu0 %1596
        %1598 = vrot.lane.b32.xlu0 %v1572, 127
        %v1599 = vpop.permute.xlu0 %1598
        %1600 = vrot.lane.b32.xlu0 %v1573, 127
        %v1601 = vpop.permute.xlu0 %1600
        %1602 = vrot.lane.b32.xlu0 %v1574, 127
        %v1603 = vpop.permute.xlu0 %1602
        %v1604 = vsel %vm362, %v1587, %v1589
        %v1605 = vsel %vm362, %v1589, %v1591
        %v1606 = vsel %vm362, %v1591, %v1593
        %v1607 = vsel %vm362, %v1593, %v1595
        %v1608 = vsel %vm362, %v1595, %v1597
        %v1609 = vsel %vm362, %v1597, %v1599
        %v1610 = vsel %vm362, %v1599, %v1601
        %v1611 = vsel %vm362, %v1601, %v1603
        %1620 = vrot.lane.b32.xlu0 %v1566, 126
        %v1621 = vpop.permute.xlu0 %1620
        %1622 = vrot.lane.b32.xlu0 %v1567, 126
        %v1623 = vpop.permute.xlu0 %1622
        %1624 = vrot.lane.b32.xlu0 %v1568, 126
        %v1625 = vpop.permute.xlu0 %1624
        %1626 = vrot.lane.b32.xlu0 %v1569, 126
        %v1627 = vpop.permute.xlu0 %1626
        %1628 = vrot.lane.b32.xlu0 %v1570, 126
        %v1629 = vpop.permute.xlu0 %1628
        %1630 = vrot.lane.b32.xlu0 %v1571, 126
        %v1631 = vpop.permute.xlu0 %1630
        %1632 = vrot.lane.b32.xlu0 %v1572, 126
        %v1633 = vpop.permute.xlu0 %1632
        %1634 = vrot.lane.b32.xlu0 %v1573, 126
        %v1635 = vpop.permute.xlu0 %1634
        %1636 = vrot.lane.b32.xlu0 %v1574, 126
        %v1637 = vpop.permute.xlu0 %1636
        %v1638 = vsel %vm410, %v1621, %v1623
        %v1639 = vsel %vm410, %v1623, %v1625
        %v1640 = vsel %vm410, %v1625, %v1627
        %v1641 = vsel %vm410, %v1627, %v1629
        %v1642 = vsel %vm410, %v1629, %v1631
        %v1643 = vsel %vm410, %v1631, %v1633
        %v1644 = vsel %vm410, %v1633, %v1635
        %v1645 = vsel %vm410, %v1635, %v1637
        %v1654 = vld [vmem:[#allocation9] sm:$0x3]
        %1656 = vrot.lane.b32.xlu0 %v1575, 127
        %v1657 = vpop.permute.xlu0 %1656
        %v1658 = vsel %vm362, %v1603, %v1657
        %1660 = vrot.lane.b32.xlu0 %v1575, 126
        %v1661 = vpop.permute.xlu0 %1660
        %v1662 = vsel %vm410, %v1637, %v1661
        %s1664 = scalar_lea.vmem [#allocation9], 2
        %v1665 = vld [vmem:[%s1664] sm:$0x3]
        %vm1666 = vcmask 392192
        %v1668 = vsel %vm1666, %v1665, 0
        %1670 = vmatprep.subr.bf16.mxu0 %v1568
        %1671 = vmatpush1.bf16.msra.mxu0 %v1567
        %1672 = vmatprep.subr.bf16.mxu0 %v1606
        %1673 = vmatpush1.bf16.msra.mxu0 %v1605
        %1674 = vmatprep.subr.bf16.mxu0 %v1640
        %1675 = vmatpush1.bf16.msra.mxu0 %v1639
        %1676 = vmatprep.subr.bf16.mxu0 0
        %1677 = vmatpush1.bf16.msra.mxu0 0
        %1678 = vmatprep.subr.bf16.mxu0 0
        %1679 = vmatpush1.bf16.msra.mxu0 0
        %1680 = vmatprep.subr.bf16.mxu0 0
        %1681 = vmatpush1.bf16.msra.mxu0 0
        %1682 = vmatprep.subr.bf16.mxu0 0
        %1683 = vmatpush1.bf16.msra.mxu0 0
        %1684 = vmatprep.subr.bf16.mxu0 0
        %1685 = vmatpush1.bf16.msra.mxu0 0
        %1686 = vmatprep.subr.bf16.mxu0 0
        %1687 = vmatpush1.bf16.msra.mxu0 0
        %1688 = vmatprep.subr.bf16.mxu0 0
        %1689 = vmatpush1.bf16.msra.mxu0 0
        %1690 = vmatprep.subr.bf16.mxu0 0
        %1691 = vmatpush1.bf16.msra.mxu0 0
        %1692 = vmatprep.subr.bf16.mxu0 0
        %1693 = vmatpush1.bf16.msra.mxu0 0
        %1694 = vmatprep.subr.bf16.mxu0 0
        %1695 = vmatpush1.bf16.msra.mxu0 0
        %1696 = vmatprep.subr.bf16.mxu0 0
        %1697 = vmatpush1.bf16.msra.mxu0 0
        %1698 = vmatprep.subr.bf16.mxu0 0
        %1699 = vmatpush1.bf16.msra.mxu0 0
        %1700 = vmatprep.subr.bf16.mxu0 0
        %1701 = vmatpush1.bf16.msra.mxu0 0
        %1702 = vmatprep.mubr.bf16.mxu0 0
        %1703 = vmatmul.mubr.bf16.gmra.mrb[0].mxu0 %v1668
        %v1704 = vpop.f32.mrb[0].mxu0
        %v1705 = vadd.f32 0.0, %v1704
        %v1706 = vpop.f32.mrb[0].mxu0
        %v1707 = vadd.f32 0.0, %v1706
        %v1708 = vpop.f32.mrb[0].mxu0
        %v1709 = vpop.f32.mrb[0].mxu0
        %1710 = vdwg.mxu0
        %1711 = vmatprep.subr.bf16.mxu0 %v1570
        %1712 = vmatpush1.bf16.msra.mxu0 %v1569
        %1713 = vmatprep.subr.bf16.mxu0 %v1608
        %1714 = vmatpush1.bf16.msra.mxu0 %v1607
        %1715 = vmatprep.subr.bf16.mxu0 %v1642
        %1716 = vmatpush1.bf16.msra.mxu0 %v1641
        %1717 = vmatprep.subr.bf16.mxu0 0
        %1718 = vmatpush1.bf16.msra.mxu0 0
        %1719 = vmatprep.subr.bf16.mxu0 0
        %1720 = vmatpush1.bf16.msra.mxu0 0
        %1721 = vmatprep.subr.bf16.mxu0 0
        %1722 = vmatpush1.bf16.msra.mxu0 0
        %1723 = vmatprep.subr.bf16.mxu0 0
        %1724 = vmatpush1.bf16.msra.mxu0 0
        %1725 = vmatprep.subr.bf16.mxu0 0
        %1726 = vmatpush1.bf16.msra.mxu0 0
        %1727 = vmatprep.subr.bf16.mxu0 0
        %1728 = vmatpush1.bf16.msra.mxu0 0
        %1729 = vmatprep.subr.bf16.mxu0 0
        %1730 = vmatpush1.bf16.msra.mxu0 0
        %1731 = vmatprep.subr.bf16.mxu0 0
        %1732 = vmatpush1.bf16.msra.mxu0 0
        %1733 = vmatprep.subr.bf16.mxu0 0
        %1734 = vmatpush1.bf16.msra.mxu0 0
        %1735 = vmatprep.subr.bf16.mxu0 0
        %1736 = vmatpush1.bf16.msra.mxu0 0
        %1737 = vmatprep.subr.bf16.mxu0 0
        %1738 = vmatpush1.bf16.msra.mxu0 0
        %1739 = vmatprep.subr.bf16.mxu0 0
        %1740 = vmatpush1.bf16.msra.mxu0 0
        %1741 = vmatprep.subr.bf16.mxu0 0
        %1742 = vmatpush1.bf16.msra.mxu0 0
        %1743 = vmatprep.mubr.bf16.mxu0 0
        %1744 = vmatmul.mubr.bf16.gmra.mrb[0].mxu0 %v1668
        %v1745 = vpop.f32.mrb[0].mxu0
        %v1746 = vadd.f32 0.0, %v1745
        %v1747 = vpop.f32.mrb[0].mxu0
        %v1748 = vadd.f32 0.0, %v1747
        %v1749 = vpop.f32.mrb[0].mxu0
        %v1750 = vpop.f32.mrb[0].mxu0
        %1751 = vdwg.mxu0
        %1752 = vmatprep.subr.bf16.mxu0 %v1572
        %1753 = vmatpush1.bf16.msra.mxu0 %v1571
        %1754 = vmatprep.subr.bf16.mxu0 %v1610
        %1755 = vmatpush1.bf16.msra.mxu0 %v1609
        %1756 = vmatprep.subr.bf16.mxu0 %v1644
        %1757 = vmatpush1.bf16.msra.mxu0 %v1643
        %1758 = vmatprep.subr.bf16.mxu0 0
        %1759 = vmatpush1.bf16.msra.mxu0 0
        %1760 = vmatprep.subr.bf16.mxu0 0
        %1761 = vmatpush1.bf16.msra.mxu0 0
        %1762 = vmatprep.subr.bf16.mxu0 0
        %1763 = vmatpush1.bf16.msra.mxu0 0
        %1764 = vmatprep.subr.bf16.mxu0 0
        %1765 = vmatpush1.bf16.msra.mxu0 0
        %1766 = vmatprep.subr.bf16.mxu0 0
        %1767 = vmatpush1.bf16.msra.mxu0 0
        %1768 = vmatprep.subr.bf16.mxu0 0
        %1769 = vmatpush1.bf16.msra.mxu0 0
        %1770 = vmatprep.subr.bf16.mxu0 0
        %1771 = vmatpush1.bf16.msra.mxu0 0
        %1772 = vmatprep.subr.bf16.mxu0 0
        %1773 = vmatpush1.bf16.msra.mxu0 0
        %1774 = vmatprep.subr.bf16.mxu0 0
        %1775 = vmatpush1.bf16.msra.mxu0 0
        %1776 = vmatprep.subr.bf16.mxu0 0
        %1777 = vmatpush1.bf16.msra.mxu0 0
        %1778 = vmatprep.subr.bf16.mxu0 0
        %1779 = vmatpush1.bf16.msra.mxu0 0
        %1780 = vmatprep.subr.bf16.mxu0 0
        %1781 = vmatpush1.bf16.msra.mxu0 0
        %1782 = vmatprep.subr.bf16.mxu0 0
        %1783 = vmatpush1.bf16.msra.mxu0 0
        %1784 = vmatprep.mubr.bf16.mxu0 0
        %1785 = vmatmul.mubr.bf16.gmra.mrb[0].mxu0 %v1668
        %v1786 = vpop.f32.mrb[0].mxu0
        %v1787 = vadd.f32 0.0, %v1786
        %v1788 = vpop.f32.mrb[0].mxu0
        %v1789 = vadd.f32 0.0, %v1788
        %v1790 = vpop.f32.mrb[0].mxu0
        %v1791 = vpop.f32.mrb[0].mxu0
        %1792 = vdwg.mxu0
        %1793 = vmatprep.subr.bf16.mxu0 %v1574
        %1794 = vmatpush1.bf16.msra.mxu0 %v1573
        %1795 = vmatprep.subr.bf16.mxu0 %v1658
        %1796 = vmatpush1.bf16.msra.mxu0 %v1611
        %1797 = vmatprep.subr.bf16.mxu0 %v1662
        %1798 = vmatpush1.bf16.msra.mxu0 %v1645
        %1799 = vmatprep.subr.bf16.mxu0 0
        %1800 = vmatpush1.bf16.msra.mxu0 0
        %1801 = vmatprep.subr.bf16.mxu0 0
        %1802 = vmatpush1.bf16.msra.mxu0 0
        %1803 = vmatprep.subr.bf16.mxu0 0
        %1804 = vmatpush1.bf16.msra.mxu0 0
        %1805 = vmatprep.subr.bf16.mxu0 0
        %1806 = vmatpush1.bf16.msra.mxu0 0
        %1807 = vmatprep.subr.bf16.mxu0 0
        %1808 = vmatpush1.bf16.msra.mxu0 0
        %1809 = vmatprep.subr.bf16.mxu0 0
        %1810 = vmatpush1.bf16.msra.mxu0 0
        %1811 = vmatprep.subr.bf16.mxu0 0
        %1812 = vmatpush1.bf16.msra.mxu0 0
        %1813 = vmatprep.subr.bf16.mxu0 0
        %1814 = vmatpush1.bf16.msra.mxu0 0
        %1815 = vmatprep.subr.bf16.mxu0 0
        %1816 = vmatpush1.bf16.msra.mxu0 0
        %1817 = vmatprep.subr.bf16.mxu0 0
        %1818 = vmatpush1.bf16.msra.mxu0 0
        %1819 = vmatprep.subr.bf16.mxu0 0
        %1820 = vmatpush1.bf16.msra.mxu0 0
        %1821 = vmatprep.subr.bf16.mxu0 0
        %1822 = vmatpush1.bf16.msra.mxu0 0
        %1823 = vmatprep.subr.bf16.mxu0 0
        %1824 = vmatpush1.bf16.msra.mxu0 0
        %1825 = vmatprep.mubr.bf16.mxu0 0
        %1826 = vmatmul.mubr.bf16.gmra.mrb[0].mxu0 %v1668
        %v1827 = vpop.f32.mrb[0].mxu0
        %v1828 = vadd.f32 0.0, %v1827
        %v1829 = vpop.f32.mrb[0].mxu0
        %v1830 = vadd.f32 0.0, %v1829
        %v1831 = vpop.f32.mrb[0].mxu0
        %v1832 = vpop.f32.mrb[0].mxu0
        %1833 = vdwg.mxu0
        %v1835 = vsel %vm1666, %v1654, 0
        %1837 = vmatprep.subr.bf16.mxu0 %v1567
        %1838 = vmatpush1.bf16.msra.mxu0 %v1566
        %1839 = vmatprep.subr.bf16.mxu0 %v1605
        %1840 = vmatpush1.bf16.msra.mxu0 %v1604
        %1841 = vmatprep.subr.bf16.mxu0 %v1639
        %1842 = vmatpush1.bf16.msra.mxu0 %v1638
        %1843 = vmatprep.subr.bf16.mxu0 0
        %1844 = vmatpush1.bf16.msra.mxu0 0
        %1845 = vmatprep.subr.bf16.mxu0 0
        %1846 = vmatpush1.bf16.msra.mxu0 0
        %1847 = vmatprep.subr.bf16.mxu0 0
        %1848 = vmatpush1.bf16.msra.mxu0 0
        %1849 = vmatprep.subr.bf16.mxu0 0
        %1850 = vmatpush1.bf16.msra.mxu0 0
        %1851 = vmatprep.subr.bf16.mxu0 0
        %1852 = vmatpush1.bf16.msra.mxu0 0
        %1853 = vmatprep.subr.bf16.mxu0 0
        %1854 = vmatpush1.bf16.msra.mxu0 0
        %1855 = vmatprep.subr.bf16.mxu0 0
        %1856 = vmatpush1.bf16.msra.mxu0 0
        %1857 = vmatprep.subr.bf16.mxu0 0
        %1858 = vmatpush1.bf16.msra.mxu0 0
        %1859 = vmatprep.subr.bf16.mxu0 0
        %1860 = vmatpush1.bf16.msra.mxu0 0
        %1861 = vmatprep.subr.bf16.mxu0 0
        %1862 = vmatpush1.bf16.msra.mxu0 0
        %1863 = vmatprep.subr.bf16.mxu0 0
        %1864 = vmatpush1.bf16.msra.mxu0 0
        %1865 = vmatprep.subr.bf16.mxu0 0
        %1866 = vmatpush1.bf16.msra.mxu0 0
        %1867 = vmatprep.subr.bf16.mxu0 0
        %1868 = vmatpush1.bf16.msra.mxu0 0
        %1869 = vmatprep.mubr.bf16.mxu0 0
        %1870 = vmatmul.mubr.bf16.gmra.mrb[0].mxu0 %v1835
        %v1871 = vpop.f32.mrb[0].mxu0
        %v1872 = vadd.f32 %v1705, %v1871
        %v1873 = vpop.f32.mrb[0].mxu0
        %v1874 = vadd.f32 %v1707, %v1873
        %v1875 = vpop.f32.mrb[0].mxu0
        %v1876 = vpop.f32.mrb[0].mxu0
        %1877 = vdwg.mxu0
        %1878 = vmatprep.subr.bf16.mxu0 %v1569
        %1879 = vmatpush1.bf16.msra.mxu0 %v1568
        %1880 = vmatprep.subr.bf16.mxu0 %v1607
        %1881 = vmatpush1.bf16.msra.mxu0 %v1606
        %1882 = vmatprep.subr.bf16.mxu0 %v1641
        %1883 = vmatpush1.bf16.msra.mxu0 %v1640
        %1884 = vmatprep.subr.bf16.mxu0 0
        %1885 = vmatpush1.bf16.msra.mxu0 0
        %1886 = vmatprep.subr.bf16.mxu0 0
        %1887 = vmatpush1.bf16.msra.mxu0 0
        %1888 = vmatprep.subr.bf16.mxu0 0
        %1889 = vmatpush1.bf16.msra.mxu0 0
        %1890 = vmatprep.subr.bf16.mxu0 0
        %1891 = vmatpush1.bf16.msra.mxu0 0
        %1892 = vmatprep.subr.bf16.mxu0 0
        %1893 = vmatpush1.bf16.msra.mxu0 0
        %1894 = vmatprep.subr.bf16.mxu0 0
        %1895 = vmatpush1.bf16.msra.mxu0 0
        %1896 = vmatprep.subr.bf16.mxu0 0
        %1897 = vmatpush1.bf16.msra.mxu0 0
        %1898 = vmatprep.subr.bf16.mxu0 0
        %1899 = vmatpush1.bf16.msra.mxu0 0
        %1900 = vmatprep.subr.bf16.mxu0 0
        %1901 = vmatpush1.bf16.msra.mxu0 0
        %1902 = vmatprep.subr.bf16.mxu0 0
        %1903 = vmatpush1.bf16.msra.mxu0 0
        %1904 = vmatprep.subr.bf16.mxu0 0
        %1905 = vmatpush1.bf16.msra.mxu0 0
        %1906 = vmatprep.subr.bf16.mxu0 0
        %1907 = vmatpush1.bf16.msra.mxu0 0
        %1908 = vmatprep.subr.bf16.mxu0 0
        %1909 = vmatpush1.bf16.msra.mxu0 0
        %1910 = vmatprep.mubr.bf16.mxu0 0
        %1911 = vmatmul.mubr.bf16.gmra.mrb[0].mxu0 %v1835
        %v1912 = vpop.f32.mrb[0].mxu0
        %v1913 = vadd.f32 %v1746, %v1912
        %v1914 = vpop.f32.mrb[0].mxu0
        %v1915 = vadd.f32 %v1748, %v1914
        %v1916 = vpop.f32.mrb[0].mxu0
        %v1917 = vpop.f32.mrb[0].mxu0
        %1918 = vdwg.mxu0
        %1919 = vmatprep.subr.bf16.mxu0 %v1571
        %1920 = vmatpush1.bf16.msra.mxu0 %v1570
        %1921 = vmatprep.subr.bf16.mxu0 %v1609
        %1922 = vmatpush1.bf16.msra.mxu0 %v1608
        %1923 = vmatprep.subr.bf16.mxu0 %v1643
        %1924 = vmatpush1.bf16.msra.mxu0 %v1642
        %1925 = vmatprep.subr.bf16.mxu0 0
        %1926 = vmatpush1.bf16.msra.mxu0 0
        %1927 = vmatprep.subr.bf16.mxu0 0
        %1928 = vmatpush1.bf16.msra.mxu0 0
        %1929 = vmatprep.subr.bf16.mxu0 0
        %1930 = vmatpush1.bf16.msra.mxu0 0
        %1931 = vmatprep.subr.bf16.mxu0 0
        %1932 = vmatpush1.bf16.msra.mxu0 0
        %1933 = vmatprep.subr.bf16.mxu0 0
        %1934 = vmatpush1.bf16.msra.mxu0 0
        %1935 = vmatprep.subr.bf16.mxu0 0
        %1936 = vmatpush1.bf16.msra.mxu0 0
        %1937 = vmatprep.subr.bf16.mxu0 0
        %1938 = vmatpush1.bf16.msra.mxu0 0
        %1939 = vmatprep.subr.bf16.mxu0 0
        %1940 = vmatpush1.bf16.msra.mxu0 0
        %1941 = vmatprep.subr.bf16.mxu0 0
        %1942 = vmatpush1.bf16.msra.mxu0 0
        %1943 = vmatprep.subr.bf16.mxu0 0
        %1944 = vmatpush1.bf16.msra.mxu0 0
        %1945 = vmatprep.subr.bf16.mxu0 0
        %1946 = vmatpush1.bf16.msra.mxu0 0
        %1947 = vmatprep.subr.bf16.mxu0 0
        %1948 = vmatpush1.bf16.msra.mxu0 0
        %1949 = vmatprep.subr.bf16.mxu0 0
        %1950 = vmatpush1.bf16.msra.mxu0 0
        %1951 = vmatprep.mubr.bf16.mxu0 0
        %1952 = vmatmul.mubr.bf16.gmra.mrb[0].mxu0 %v1835
        %v1953 = vpop.f32.mrb[0].mxu0
        %v1954 = vadd.f32 %v1787, %v1953
        %v1955 = vpop.f32.mrb[0].mxu0
        %v1956 = vadd.f32 %v1789, %v1955
        %v1957 = vpop.f32.mrb[0].mxu0
        %v1958 = vpop.f32.mrb[0].mxu0
        %1959 = vdwg.mxu0
        %1960 = vmatprep.subr.bf16.mxu0 %v1573
        %1961 = vmatpush1.bf16.msra.mxu0 %v1572
        %1962 = vmatprep.subr.bf16.mxu0 %v1611
        %1963 = vmatpush1.bf16.msra.mxu0 %v1610
        %1964 = vmatprep.subr.bf16.mxu0 %v1645
        %1965 = vmatpush1.bf16.msra.mxu0 %v1644
        %1966 = vmatprep.subr.bf16.mxu0 0
        %1967 = vmatpush1.bf16.msra.mxu0 0
        %1968 = vmatprep.subr.bf16.mxu0 0
        %1969 = vmatpush1.bf16.msra.mxu0 0
        %1970 = vmatprep.subr.bf16.mxu0 0
        %1971 = vmatpush1.bf16.msra.mxu0 0
        %1972 = vmatprep.subr.bf16.mxu0 0
        %1973 = vmatpush1.bf16.msra.mxu0 0
        %1974 = vmatprep.subr.bf16.mxu0 0
        %1975 = vmatpush1.bf16.msra.mxu0 0
        %1976 = vmatprep.subr.bf16.mxu0 0
        %1977 = vmatpush1.bf16.msra.mxu0 0
        %1978 = vmatprep.subr.bf16.mxu0 0
        %1979 = vmatpush1.bf16.msra.mxu0 0
        %1980 = vmatprep.subr.bf16.mxu0 0
        %1981 = vmatpush1.bf16.msra.mxu0 0
        %1982 = vmatprep.subr.bf16.mxu0 0
        %1983 = vmatpush1.bf16.msra.mxu0 0
        %1984 = vmatprep.subr.bf16.mxu0 0
        %1985 = vmatpush1.bf16.msra.mxu0 0
        %1986 = vmatprep.subr.bf16.mxu0 0
        %1987 = vmatpush1.bf16.msra.mxu0 0
        %1988 = vmatprep.subr.bf16.mxu0 0
        %1989 = vmatpush1.bf16.msra.mxu0 0
        %1990 = vmatprep.subr.bf16.mxu0 0
        %1991 = vmatpush1.bf16.msra.mxu0 0
        %1992 = vmatprep.mubr.bf16.mxu0 0
        %1993 = vmatmul.mubr.bf16.gmra.mrb[0].mxu0 %v1835
        %v1994 = vpop.f32.mrb[0].mxu0
        %v1995 = vadd.f32 %v1828, %v1994
        %v1996 = vpop.f32.mrb[0].mxu0
        %v1997 = vadd.f32 %v1830, %v1996
        %v1998 = vpop.f32.mrb[0].mxu0
        %v1999 = vpop.f32.mrb[0].mxu0
        %2000 = vdwg.mxu0
        %2002 = vrot.lane.b32.xlu0 %v1576, 127
        %v2003 = vpop.permute.xlu0 %2002
        %v2004 = vsel %vm362, %v1657, %v2003
        %2006 = vrot.lane.b32.xlu0 %v1576, 126
        %v2007 = vpop.permute.xlu0 %2006
        %v2008 = vsel %vm410, %v1661, %v2007
        %s2010 = scalar_lea.vmem [#allocation9], 4
        %v2011 = vld [vmem:[%s2010] sm:$0x3]
        %v2013 = vsel %vm1666, %v2011, 0
        %2015 = vmatprep.subr.bf16.mxu0 %v1569
        %2016 = vmatpush1.bf16.msra.mxu0 %v1568
        %2017 = vmatprep.subr.bf16.mxu0 %v1607
        %2018 = vmatpush1.bf16.msra.mxu0 %v1606
        %2019 = vmatprep.subr.bf16.mxu0 %v1641
        %2020 = vmatpush1.bf16.msra.mxu0 %v1640
        %2021 = vmatprep.subr.bf16.mxu0 0
        %2022 = vmatpush1.bf16.msra.mxu0 0
        %2023 = vmatprep.subr.bf16.mxu0 0
        %2024 = vmatpush1.bf16.msra.mxu0 0
        %2025 = vmatprep.subr.bf16.mxu0 0
        %2026 = vmatpush1.bf16.msra.mxu0 0
        %2027 = vmatprep.subr.bf16.mxu0 0
        %2028 = vmatpush1.bf16.msra.mxu0 0
        %2029 = vmatprep.subr.bf16.mxu0 0
        %2030 = vmatpush1.bf16.msra.mxu0 0
        %2031 = vmatprep.subr.bf16.mxu0 0
        %2032 = vmatpush1.bf16.msra.mxu0 0
        %2033 = vmatprep.subr.bf16.mxu0 0
        %2034 = vmatpush1.bf16.msra.mxu0 0
        %2035 = vmatprep.subr.bf16.mxu0 0
        %2036 = vmatpush1.bf16.msra.mxu0 0
        %2037 = vmatprep.subr.bf16.mxu0 0
        %2038 = vmatpush1.bf16.msra.mxu0 0
        %2039 = vmatprep.subr.bf16.mxu0 0
        %2040 = vmatpush1.bf16.msra.mxu0 0
        %2041 = vmatprep.subr.bf16.mxu0 0
        %2042 = vmatpush1.bf16.msra.mxu0 0
        %2043 = vmatprep.subr.bf16.mxu0 0
        %2044 = vmatpush1.bf16.msra.mxu0 0
        %2045 = vmatprep.subr.bf16.mxu0 0
        %2046 = vmatpush1.bf16.msra.mxu0 0
        %2047 = vmatprep.mubr.bf16.mxu0 0
        %2048 = vmatmul.mubr.bf16.gmra.mrb[0].mxu0 %v2013
        %v2049 = vpop.f32.mrb[0].mxu0
        %v2050 = vadd.f32 0.0, %v2049
        %v2051 = vpop.f32.mrb[0].mxu0
        %v2052 = vadd.f32 0.0, %v2051
        %v2053 = vpop.f32.mrb[0].mxu0
        %v2054 = vpop.f32.mrb[0].mxu0
        %2055 = vdwg.mxu0
        %2056 = vmatprep.subr.bf16.mxu0 %v1571
        %2057 = vmatpush1.bf16.msra.mxu0 %v1570
        %2058 = vmatprep.subr.bf16.mxu0 %v1609
        %2059 = vmatpush1.bf16.msra.mxu0 %v1608
        %2060 = vmatprep.subr.bf16.mxu0 %v1643
        %2061 = vmatpush1.bf16.msra.mxu0 %v1642
        %2062 = vmatprep.subr.bf16.mxu0 0
        %2063 = vmatpush1.bf16.msra.mxu0 0
        %2064 = vmatprep.subr.bf16.mxu0 0
        %2065 = vmatpush1.bf16.msra.mxu0 0
        %2066 = vmatprep.subr.bf16.mxu0 0
        %2067 = vmatpush1.bf16.msra.mxu0 0
        %2068 = vmatprep.subr.bf16.mxu0 0
        %2069 = vmatpush1.bf16.msra.mxu0 0
        %2070 = vmatprep.subr.bf16.mxu0 0
        %2071 = vmatpush1.bf16.msra.mxu0 0
        %2072 = vmatprep.subr.bf16.mxu0 0
        %2073 = vmatpush1.bf16.msra.mxu0 0
        %2074 = vmatprep.subr.bf16.mxu0 0
        %2075 = vmatpush1.bf16.msra.mxu0 0
        %2076 = vmatprep.subr.bf16.mxu0 0
        %2077 = vmatpush1.bf16.msra.mxu0 0
        %2078 = vmatprep.subr.bf16.mxu0 0
        %2079 = vmatpush1.bf16.msra.mxu0 0
        %2080 = vmatprep.subr.bf16.mxu0 0
        %2081 = vmatpush1.bf16.msra.mxu0 0
        %2082 = vmatprep.subr.bf16.mxu0 0
        %2083 = vmatpush1.bf16.msra.mxu0 0
        %2084 = vmatprep.subr.bf16.mxu0 0
        %2085 = vmatpush1.bf16.msra.mxu0 0
        %2086 = vmatprep.subr.bf16.mxu0 0
        %2087 = vmatpush1.bf16.msra.mxu0 0
        %2088 = vmatprep.mubr.bf16.mxu0 0
        %2089 = vmatmul.mubr.bf16.gmra.mrb[0].mxu0 %v2013
        %v2090 = vpop.f32.mrb[0].mxu0
        %v2091 = vadd.f32 0.0, %v2090
        %v2092 = vpop.f32.mrb[0].mxu0
        %v2093 = vadd.f32 0.0, %v2092
        %v2094 = vpop.f32.mrb[0].mxu0
        %v2095 = vpop.f32.mrb[0].mxu0
        %2096 = vdwg.mxu0
        %2097 = vmatprep.subr.bf16.mxu0 %v1573
        %2098 = vmatpush1.bf16.msra.mxu0 %v1572
        %2099 = vmatprep.subr.bf16.mxu0 %v1611
        %2100 = vmatpush1.bf16.msra.mxu0 %v1610
        %2101 = vmatprep.subr.bf16.mxu0 %v1645
        %2102 = vmatpush1.bf16.msra.mxu0 %v1644
        %2103 = vmatprep.subr.bf16.mxu0 0
        %2104 = vmatpush1.bf16.msra.mxu0 0
        %2105 = vmatprep.subr.bf16.mxu0 0
        %2106 = vmatpush1.bf16.msra.mxu0 0
        %2107 = vmatprep.subr.bf16.mxu0 0
        %2108 = vmatpush1.bf16.msra.mxu0 0
        %2109 = vmatprep.subr.bf16.mxu0 0
        %2110 = vmatpush1.bf16.msra.mxu0 0
        %2111 = vmatprep.subr.bf16.mxu0 0
        %2112 = vmatpush1.bf16.msra.mxu0 0
        %2113 = vmatprep.subr.bf16.mxu0 0
        %2114 = vmatpush1.bf16.msra.mxu0 0
        %2115 = vmatprep.subr.bf16.mxu0 0
        %2116 = vmatpush1.bf16.msra.mxu0 0
        %2117 = vmatprep.subr.bf16.mxu0 0
        %2118 = vmatpush1.bf16.msra.mxu0 0
        %2119 = vmatprep.subr.bf16.mxu0 0
        %2120 = vmatpush1.bf16.msra.mxu0 0
        %2121 = vmatprep.subr.bf16.mxu0 0
        %2122 = vmatpush1.bf16.msra.mxu0 0
        %2123 = vmatprep.subr.bf16.mxu0 0
        %2124 = vmatpush1.bf16.msra.mxu0 0
        %2125 = vmatprep.subr.bf16.mxu0 0
        %2126 = vmatpush1.bf16.msra.mxu0 0
        %2127 = vmatprep.subr.bf16.mxu0 0
        %2128 = vmatpush1.bf16.msra.mxu0 0
        %2129 = vmatprep.mubr.bf16.mxu0 0
        %2130 = vmatmul.mubr.bf16.gmra.mrb[0].mxu0 %v2013
        %v2131 = vpop.f32.mrb[0].mxu0
        %v2132 = vadd.f32 0.0, %v2131
        %v2133 = vpop.f32.mrb[0].mxu0
        %v2134 = vadd.f32 0.0, %v2133
        %v2135 = vpop.f32.mrb[0].mxu0
        %v2136 = vpop.f32.mrb[0].mxu0
        %2137 = vdwg.mxu0
        %2138 = vmatprep.subr.bf16.mxu0 %v1575
        %2139 = vmatpush1.bf16.msra.mxu0 %v1574
        %2140 = vmatprep.subr.bf16.mxu0 %v2004
        %2141 = vmatpush1.bf16.msra.mxu0 %v1658
        %2142 = vmatprep.subr.bf16.mxu0 %v2008
        %2143 = vmatpush1.bf16.msra.mxu0 %v1662
        %2144 = vmatprep.subr.bf16.mxu0 0
        %2145 = vmatpush1.bf16.msra.mxu0 0
        %2146 = vmatprep.subr.bf16.mxu0 0
        %2147 = vmatpush1.bf16.msra.mxu0 0
        %2148 = vmatprep.subr.bf16.mxu0 0
        %2149 = vmatpush1.bf16.msra.mxu0 0
        %2150 = vmatprep.subr.bf16.mxu0 0
        %2151 = vmatpush1.bf16.msra.mxu0 0
        %2152 = vmatprep.subr.bf16.mxu0 0
        %2153 = vmatpush1.bf16.msra.mxu0 0
        %2154 = vmatprep.subr.bf16.mxu0 0
        %2155 = vmatpush1.bf16.msra.mxu0 0
        %2156 = vmatprep.subr.bf16.mxu0 0
        %2157 = vmatpush1.bf16.msra.mxu0 0
        %2158 = vmatprep.subr.bf16.mxu0 0
        %2159 = vmatpush1.bf16.msra.mxu0 0
        %2160 = vmatprep.subr.bf16.mxu0 0
        %2161 = vmatpush1.bf16.msra.mxu0 0
        %2162 = vmatprep.subr.bf16.mxu0 0
        %2163 = vmatpush1.bf16.msra.mxu0 0
        %2164 = vmatprep.subr.bf16.mxu0 0
        %2165 = vmatpush1.bf16.msra.mxu0 0
        %2166 = vmatprep.subr.bf16.mxu0 0
        %2167 = vmatpush1.bf16.msra.mxu0 0
        %2168 = vmatprep.subr.bf16.mxu0 0
        %2169 = vmatpush1.bf16.msra.mxu0 0
        %2170 = vmatprep.mubr.bf16.mxu0 0
        %2171 = vmatmul.mubr.bf16.gmra.mrb[0].mxu0 %v2013
        %v2172 = vpop.f32.mrb[0].mxu0
        %v2173 = vadd.f32 0.0, %v2172
        %v2174 = vpop.f32.mrb[0].mxu0
        %v2175 = vadd.f32 0.0, %v2174
        %v2176 = vpop.f32.mrb[0].mxu0
        %v2177 = vpop.f32.mrb[0].mxu0
        %2178 = vdwg.mxu0
        %v2179 = vadd.f32 %v1872, %v2050
        %v2180 = vadd.f32 %v1874, %v2052
        %v2181 = vadd.f32 %v1913, %v2091
        %v2182 = vadd.f32 %v1915, %v2093
        %v2183 = vadd.f32 %v1954, %v2132
        %v2184 = vadd.f32 %v1956, %v2134
        %v2185 = vadd.f32 %v1995, %v2173
        %v2186 = vadd.f32 %v1997, %v2175
        %v2187 = vld [vmem:[#allocation10] sm:$0xf]
        %2189 = vset.pattern.permute.xlu0 0
        %2190 = vperm.xlu0 %2189, %v2187
        %v2191 = vpop.permute.xlu0 %2190
        %v2193 = vadd.f32 %v2179, %v2191
        %v2194 = vadd.f32 %v2180, %v2191
        %v2195 = vadd.f32 %v2181, %v2191
        %v2196 = vadd.f32 %v2182, %v2191
        %v2197 = vadd.f32 %v2183, %v2191
        %v2198 = vadd.f32 %v2184, %v2191
        %v2199 = vadd.f32 %v2185, %v2191
        %v2200 = vadd.f32 %v2186, %v2191
        %2201 = vrot.lane.b32.xlu0 %v273, 126
        %v2202 = vpop.permute.xlu0 %2201
        %2203 = vrot.lane.b32.xlu0 %v287, 126
        %v2204 = vpop.permute.xlu0 %2203
        %2205 = vrot.lane.b32.xlu0 %v274, 126
        %v2206 = vpop.permute.xlu0 %2205
        %2207 = vrot.lane.b32.xlu0 %v288, 126
        %v2208 = vpop.permute.xlu0 %2207
        %2209 = vrot.lane.b32.xlu0 %v275, 126
        %v2210 = vpop.permute.xlu0 %2209
        %2211 = vrot.lane.b32.xlu0 %v289, 126
        %v2212 = vpop.permute.xlu0 %2211
        %2213 = vrot.lane.b32.xlu0 %v276, 126
        %v2214 = vpop.permute.xlu0 %2213
        %2215 = vrot.lane.b32.xlu0 %v290, 126
        %v2216 = vpop.permute.xlu0 %2215
        %2217 = vrot.lane.b32.xlu0 %v277, 126
        %v2218 = vpop.permute.xlu0 %2217
        %vm2219 = vcmask 1031168
        %v2220 = vsel %vm2219, %v2202, %v2204
        %v2221 = vsel %vm2219, %v2204, %v2206
        %v2222 = vsel %vm2219, %v2206, %v2208
        %v2223 = vsel %vm2219, %v2208, %v2210
        %v2224 = vsel %vm2219, %v2210, %v2212
        %v2225 = vsel %vm2219, %v2212, %v2214
        %v2226 = vsel %vm2219, %v2214, %v2216
        %v2227 = vsel %vm2219, %v2216, %v2218
        %v2236 = vadd.f32 %v2193, %v2220
        %v2237 = vadd.f32 %v2194, %v2221
        %v2238 = vadd.f32 %v2195, %v2222
        %v2239 = vadd.f32 %v2196, %v2223
        %v2240 = vadd.f32 %v2197, %v2224
        %v2241 = vadd.f32 %v2198, %v2225
        %v2242 = vadd.f32 %v2199, %v2226
        %v2243 = vadd.f32 %v2200, %v2227
        %v2252 = vcombine.low %v2236, %v2237
        %v2253 = vcombine.low %v2238, %v2239
        %v2254 = vcombine.low %v2240, %v2241
        %v2255 = vcombine.low %v2242, %v2243
        %2260 = vst [vmem:[%s247] sm:$0xff] %v2252
        %2261 = vst [vmem:[%s247 + $0x8] sm:$0xff] %v2253
        %2262 = vst [vmem:[%s247 + $0x10] sm:$0xff] %v2254
        %2263 = vst [vmem:[%s247 + $0x18] sm:$0xff] %v2255
        %s2264 = sand.u32 %s128, 1
        %s2265 = scalar_lea.sflag [#allocation6], %s2264
        %s2266 = sand.u32 %s128, 1
        %s2267 = smul.addr %s2266, 32
        %s2268 = scalar_lea.vmem [#allocation12], %s2267
        // Predicated region
        $region57: #{tpu_custom_call.1} parent=35 // pred_check
          %p2269 = pneg %p138
        $region58: #{tpu_custom_call.1} parent=35 // pred_check_branch
          %2271 = sbr.rel (%p2269) target = $region60
        $region59: #{tpu_custom_call.1} parent=35 // pred_region
          %s2272 = smul.u32 8, %s27
          %s2274 = ssub.s32 512, 512
          %2275 = vsyncadd %s2265, %s2274
          %s2276 = smul.addr %s26, 16
          %s2277 = sadd.s32 %s2272, %s2276
          %s2278 = smul.addr %s2277, 64
          %s2279 = scalar_lea.hbm %s5, %s2278
          %s2281 = sshll.u32 %s2268, 4
          %s2282 = int_to_ptr.vmem [resolvable:$true] %s2281
          %2284 = dma.vmem_to_hbm [thread:$0]  %s2282, 512, %s2279, %s2265
        $region60: #{tpu_custom_call.1} parent=35 // pred_fallthru
          _
      $region36: #{tpu_custom_call.1} parent=5 // pred_fallthru
        _
      %p2285 = scmp.le.s32.totalorder 2, %s17
      // Predicated region
      $region61: #{tpu_custom_call.1} parent=5 // pred_check
        %p2286 = pneg %p2285
      $region62: #{tpu_custom_call.1} parent=5 // pred_check_branch
        %2288 = sbr.rel (%p2286) target = $region64
      $region63: #{tpu_custom_call.1} parent=5 // pred_region
        %s2289 = ssub.s32 %s17, 2
        // Predicated region
        $region65: #{tpu_custom_call.1} parent=63 // pred_check
          %p2290 = pneg %p144
        $region66: #{tpu_custom_call.1} parent=63 // pred_check_branch
          %2292 = sbr.rel (%p2290) target = $region68
        $region67: #{tpu_custom_call.1} parent=63 // pred_region
          %s2293 = sand.u32 %s129, 1
          %s2294 = scalar_lea.sflag [#allocation6], %s2293
          %s2295 = sand.u32 %s129, 1
          %s2296 = smul.addr %s2295, 32
          %s2297 = scalar_lea.vmem [#allocation12], %s2296
          %2298 = dma.done %s2294, 512
        $region68: #{tpu_custom_call.1} parent=63 // pred_fallthru
          _
      $region64: #{tpu_custom_call.1} parent=5 // pred_fallthru
        _
    $region6: #{tpu_custom_call.1} parent=1 // loop_footer
      %s21 = sadd.s32 1, %s17
    $region7: #{tpu_custom_call.1} parent=1 // loop_footer_branch
      %16 = sbr.rel target = $region3
    $region8: #{tpu_custom_call.1} parent=1 // loop_exit
      _
    %2299 = vsyncpa [#allocation5], 1
    %s2300 = scalar_lea.sflag [#allocation5], 1
    %2301 = vsyncpa %s2300, 1
    %2302 = vsyncpa [#allocation8], 1
    %2303 = vsyncpa [#allocation11], 1
    %2304 = vsyncpa [#allocation6], 1
    %s2305 = scalar_lea.sflag [#allocation6], 1
    %2306 = vsyncpa %s2305, 1
  %2307 = vsyncmov [#allocation3]
  %s2308 = vpop.sfrf %2307
  %p2309 = scmp.eq.s32.totalorder %s2308, 0
  %p2310 = pneg %p2309
  %2312 = shalt.err (%p2310)

</llo_original>
